<compile_context>
chip_gen: v7x
topology: tpu7x:2x2x1
jax: 0.10.0
libtpu: 0.0.40
codegen_flags: <defaults>
</compile_context>

<pallas_src>
import jax
import jax.numpy as jnp
from jax.experimental import pallas as pl
from jax.experimental.pallas import tpu as pltpu


# ----------------------------------------------------------------------------
# Fast path: per-(batch, channel) blocks, strip loads + lane-dense slab store.
# ----------------------------------------------------------------------------
def _make_fast_kernel(X, Y, pw, ph):
    def kernel(x_ref, o_ref):
        # x_ref: (D2, D3) = (X*pw, Y*ph)  -- one (batch, channel) image
        # o_ref: (X*Y, pw*ph)             -- its patch rows, lane-dense
        pieces = []
        for w in range(pw):  # pw is small & static -> cheap unroll
            # Full-lane strided load of all rows congruent to w (mod pw):
            #   v[x, y*ph + h] = img[x*pw + w, y*ph + h]
            v = x_ref[pl.ds(w, X, stride=pw), :]          # (X, Y*ph)
            # Pure row-major reshape (no transpose needed):
            #   flat = x*(Y*ph) + y*ph + h  ->  (x*Y + y, h)
            pieces.append(v.reshape(X * Y, ph))           # (X*Y, ph)
        # One lane-dense block store; piece w occupies lanes [w*ph, (w+1)*ph).
        o_ref[...] = jnp.concatenate(pieces, axis=1)      # (X*Y, pw*ph)
    return kernel


def _img_to_patches_fast(img, X, Y, pw, ph):
    B, C, D2, D3 = img.shape
    kernel = _make_fast_kernel(X, Y, pw, ph)
    return pl.pallas_call(
        kernel,
        out_shape=jax.ShapeDtypeStruct((B, C, X * Y, pw * ph), img.dtype),
        grid_spec=pltpu.PrefetchScalarGridSpec(
            num_scalar_prefetch=0,
            grid=(B, C),
            in_specs=[
                pl.BlockSpec((None, None, D2, D3), lambda b, c: (b, c, 0, 0)),
            ],
            out_specs=pl.BlockSpec(
                (None, None, X * Y, pw * ph), lambda b, c: (b, c, 0, 0)),
        ),
        compiler_params=pltpu.CompilerParams(
            dimension_semantics=("parallel", "parallel")),
        cost_estimate=pl.CostEstimate(
            flops=0,
            transcendentals=0,
            bytes_accessed=2 * B * C * D2 * D3 * img.dtype.itemsize),
    )(img)


# ----------------------------------------------------------------------------
# Fallback path (known-good, per-patch slice copies). Only used if the fast
# kernel fails to lower on an older Mosaic toolchain.
# ----------------------------------------------------------------------------
def _make_safe_kernel(C, X, Y, pw, ph):
    def kernel(x_ref, o_ref):
        # x_ref: (1, C, D2, D3)   o_ref: (1, C*X*Y, pw, ph)
        for c in range(C):
            for x in range(X):
                for y in range(Y):
                    row = (c * X + x) * Y + y
                    o_ref[0, row, :, :] = x_ref[
                        0, c, x * pw:(x + 1) * pw, y * ph:(y + 1) * ph]
    return kernel


def _img_to_patches_safe(img, X, Y, pw, ph):
    B, C, D2, D3 = img.shape
    n_rows = C * X * Y
    kernel = _make_safe_kernel(C, X, Y, pw, ph)
    return pl.pallas_call(
        kernel,
        out_shape=jax.ShapeDtypeStruct((B, n_rows, pw, ph), img.dtype),
        grid_spec=pltpu.PrefetchScalarGridSpec(
            num_scalar_prefetch=0,
            grid=(B,),
            in_specs=[pl.BlockSpec((1, C, D2, D3), lambda b: (b, 0, 0, 0))],
            out_specs=pl.BlockSpec((1, n_rows, pw, ph), lambda b: (b, 0, 0, 0)),
        ),
        compiler_params=pltpu.CompilerParams(dimension_semantics=("parallel",)),
    )(img)


# ----------------------------------------------------------------------------
# Public wrapper (matches ImgToPatches.forward; the module has no parameters).
# ----------------------------------------------------------------------------
def img_to_patches(img, patch_width, patch_height):
    B, C, D2, D3 = img.shape
    if D2 % patch_width != 0:
        raise ValueError('Image width must be divisible by patch width.')
    if D3 % patch_height != 0:
        raise ValueError('Image height must be divisible by patch height.')
    X = D2 // patch_width
    Y = D3 // patch_height
    n_rows = C * X * Y  # == _num_patch_channels

    try:
        out = _img_to_patches_fast(img, X, Y, patch_width, patch_height)
    except Exception:
        # TODO(synk): drop this fallback once the deployed Mosaic version is
        # pinned to one with general relayout support for lane-splitting
        # reshape / unaligned lane concat.
        out = _img_to_patches_safe(img, X, Y, patch_width, patch_height)

    # Both layouts are contiguous row-major matches of the target; this reshape
    # is a zero-cost view (fast: (B, C, X*Y, pw*ph); safe: (B, n_rows, pw, ph)).
    return out.reshape(B, n_rows, patch_width * patch_height)


def img_to_patches_ref(img, pw, ph):
    """Pure-JAX reference replicating torch unfold(2,pw)+unfold(3,ph)+rearrange."""
    B, C, D2, D3 = img.shape
    X, Y = D2 // pw, D3 // ph
    r = img.reshape(B, C, X, pw, Y, ph)          # b c x w y h
    r = jnp.transpose(r, (0, 1, 2, 4, 3, 5))     # b c x y w h
    return r.reshape(B, C * X * Y, pw * ph)      # b (c x y) (w h)


if __name__ == "__main__":
    key = jax.random.PRNGKey(0)
    B, C, H, W = 2, 4, 16, 16
    pw, ph = 4, 4
    img = jax.random.normal(key, (B, C, H, W), dtype=jnp.float32)

    out = img_to_patches(img, pw, ph)
    out = jax.block_until_ready(out)

    ref = img_to_patches_ref(img, pw, ph)
    assert out.shape == (B, C * (H // pw) * (W // ph), pw * ph), out.shape
    assert jnp.allclose(out, ref), "mismatch vs reference rearrange"
    print("KERNEL_OK")
</pallas_src>

<mosaic_0001>
module attributes {stable_mosaic.version = 11 : i64} {
  func.func @kernel(%arg0: i32, %arg1: i32, %arg2: memref<1x1x16x16xf32, #tpu.memory_space<vmem>>, %arg3: memref<1x1x16x16xf32, #tpu.memory_space<vmem>>) attributes {dimension_semantics = [#tpu.dimension_semantics<parallel>, #tpu.dimension_semantics<parallel>], iteration_bounds = array<i64: 2, 4>, scalar_prefetch = 0 : i64, scratch_operands = 0 : i64, tpu.core_type = #tpu.core_type<tc>, window_params = [{transform_indices = @transform_0, window_bounds = array<i64: 1, 1, 16, 16>}, {transform_indices = @transform_1, window_bounds = array<i64: 1, 1, 16, 16>}]} {
    %c0 = arith.constant 0 : index
    %c0_0 = arith.constant 0 : index
    %c0_1 = arith.constant 0 : index
    %c0_2 = arith.constant 0 : index
    %0 = tpu.strided_load %arg2[%c0, %c0_0, %c0_1, %c0_2] {strides = array<i32: 1, 1, 4, 1>} : memref<1x1x16x16xf32, #tpu.memory_space<vmem>>, vector<1x1x4x16xf32>
    %1 = vector.shape_cast %0 : vector<1x1x4x16xf32> to vector<4x16xf32>
    %2 = vector.shape_cast %1 : vector<4x16xf32> to vector<16x4xf32>
    %c0_3 = arith.constant 0 : index
    %c0_4 = arith.constant 0 : index
    %c1 = arith.constant 1 : index
    %c0_5 = arith.constant 0 : index
    %3 = tpu.strided_load %arg2[%c0_3, %c0_4, %c1, %c0_5] {strides = array<i32: 1, 1, 4, 1>} : memref<1x1x16x16xf32, #tpu.memory_space<vmem>>, vector<1x1x4x16xf32>
    %4 = vector.shape_cast %3 : vector<1x1x4x16xf32> to vector<4x16xf32>
    %5 = vector.shape_cast %4 : vector<4x16xf32> to vector<16x4xf32>
    %c0_6 = arith.constant 0 : index
    %c0_7 = arith.constant 0 : index
    %c2 = arith.constant 2 : index
    %c0_8 = arith.constant 0 : index
    %6 = tpu.strided_load %arg2[%c0_6, %c0_7, %c2, %c0_8] {strides = array<i32: 1, 1, 4, 1>} : memref<1x1x16x16xf32, #tpu.memory_space<vmem>>, vector<1x1x4x16xf32>
    %7 = vector.shape_cast %6 : vector<1x1x4x16xf32> to vector<4x16xf32>
    %8 = vector.shape_cast %7 : vector<4x16xf32> to vector<16x4xf32>
    %c0_9 = arith.constant 0 : index
    %c0_10 = arith.constant 0 : index
    %c3 = arith.constant 3 : index
    %c0_11 = arith.constant 0 : index
    %9 = tpu.strided_load %arg2[%c0_9, %c0_10, %c3, %c0_11] {strides = array<i32: 1, 1, 4, 1>} : memref<1x1x16x16xf32, #tpu.memory_space<vmem>>, vector<1x1x4x16xf32>
    %10 = vector.shape_cast %9 : vector<1x1x4x16xf32> to vector<4x16xf32>
    %11 = vector.shape_cast %10 : vector<4x16xf32> to vector<16x4xf32>
    %12 = tpu.concatenate %2, %5, %8, %11 in 1 : vector<16x4xf32>, vector<16x4xf32>, vector<16x4xf32>, vector<16x4xf32> -> vector<16x16xf32>
    %c0_12 = arith.constant 0 : index
    %c0_13 = arith.constant 0 : index
    %c0_14 = arith.constant 0 : index
    %c0_15 = arith.constant 0 : index
    %13 = vector.load %arg3[%c0_12, %c0_13, %c0_14, %c0_15] : memref<1x1x16x16xf32, #tpu.memory_space<vmem>>, vector<1x1x16x16xf32>
    %14 = vector.shape_cast %13 : vector<1x1x16x16xf32> to vector<16x16xf32>
    %15 = vector.shape_cast %12 : vector<16x16xf32> to vector<1x1x16x16xf32>
    tpu.vector_store %arg3[%c0_12, %c0_13, %c0_14, %c0_15], %15 {strides = array<i32>} : memref<1x1x16x16xf32, #tpu.memory_space<vmem>>, vector<1x1x16x16xf32>,
    return
  }
  func.func @transform_0(%arg0: i32, %arg1: i32) -> (i32, i32, i32, i32) {
    %c0_i32 = arith.constant 0 : i32
    %c0_i32_0 = arith.constant 0 : i32
    %c0_i32_1 = arith.constant 0 : i32
    return %arg0, %arg1, %c0_i32, %c0_i32_0 : i32, i32, i32, i32
  }
  func.func @transform_1(%arg0: i32, %arg1: i32) -> (i32, i32, i32, i32) {
    %c0_i32 = arith.constant 0 : i32
    %c0_i32_0 = arith.constant 0 : i32
    %c0_i32_1 = arith.constant 0 : i32
    return %arg0, %arg1, %c0_i32, %c0_i32_0 : i32, i32, i32, i32
  }
}

module attributes {stable_mosaic.version = 11 : i64} {
  func.func @kernel(%arg0: i32, %arg1: memref<1x4x16x16xf32, #tpu.memory_space<vmem>>, %arg2: memref<1x64x4x4xf32, #tpu.memory_space<vmem>>) attributes {dimension_semantics = [#tpu.dimension_semantics<parallel>], iteration_bounds = array<i64: 2>, scalar_prefetch = 0 : i64, scratch_operands = 0 : i64, tpu.core_type = #tpu.core_type<tc>, window_params = [{transform_indices = @transform_0, window_bounds = array<i64: 1, 4, 16, 16>}, {transform_indices = @transform_1, window_bounds = array<i64: 1, 64, 4, 4>}]} {
    %c0 = arith.constant 0 : index
    %c0_0 = arith.constant 0 : index
    %c0_1 = arith.constant 0 : index
    %c0_2 = arith.constant 0 : index
    %0 = vector.load %arg1[%c0, %c0_0, %c0_1, %c0_2] : memref<1x4x16x16xf32, #tpu.memory_space<vmem>>, vector<1x1x4x4xf32>
    %1 = vector.shape_cast %0 : vector<1x1x4x4xf32> to vector<4x4xf32>
    %c0_3 = arith.constant 0 : index
    %c0_4 = arith.constant 0 : index
    %c0_5 = arith.constant 0 : index
    %c0_6 = arith.constant 0 : index
    %2 = vector.load %arg2[%c0_3, %c0_4, %c0_5, %c0_6] : memref<1x64x4x4xf32, #tpu.memory_space<vmem>>, vector<1x1x4x4xf32>
    %3 = vector.shape_cast %2 : vector<1x1x4x4xf32> to vector<4x4xf32>
    %4 = vector.shape_cast %1 : vector<4x4xf32> to vector<1x1x4x4xf32>
    tpu.vector_store %arg2[%c0_3, %c0_4, %c0_5, %c0_6], %4 {strides = array<i32>} : memref<1x64x4x4xf32, #tpu.memory_space<vmem>>, vector<1x1x4x4xf32>,
    %c0_7 = arith.constant 0 : index
    %c0_8 = arith.constant 0 : index
    %c0_9 = arith.constant 0 : index
    %c4 = arith.constant 4 : index
    %5 = vector.load %arg1[%c0_7, %c0_8, %c0_9, %c4] : memref<1x4x16x16xf32, #tpu.memory_space<vmem>>, vector<1x1x4x4xf32>
    %6 = vector.shape_cast %5 : vector<1x1x4x4xf32> to vector<4x4xf32>
    %c0_10 = arith.constant 0 : index
    %c1 = arith.constant 1 : index
    %c0_11 = arith.constant 0 : index
    %c0_12 = arith.constant 0 : index
    %7 = vector.load %arg2[%c0_10, %c1, %c0_11, %c0_12] : memref<1x64x4x4xf32, #tpu.memory_space<vmem>>, vector<1x1x4x4xf32>
    %8 = vector.shape_cast %7 : vector<1x1x4x4xf32> to vector<4x4xf32>
    %9 = vector.shape_cast %6 : vector<4x4xf32> to vector<1x1x4x4xf32>
    tpu.vector_store %arg2[%c0_10, %c1, %c0_11, %c0_12], %9 {strides = array<i32>} : memref<1x64x4x4xf32, #tpu.memory_space<vmem>>, vector<1x1x4x4xf32>,
    %c0_13 = arith.constant 0 : index
    %c0_14 = arith.constant 0 : index
    %c0_15 = arith.constant 0 : index
    %c8 = arith.constant 8 : index
    %10 = vector.load %arg1[%c0_13, %c0_14, %c0_15, %c8] : memref<1x4x16x16xf32, #tpu.memory_space<vmem>>, vector<1x1x4x4xf32>
    %11 = vector.shape_cast %10 : vector<1x1x4x4xf32> to vector<4x4xf32>
    %c0_16 = arith.constant 0 : index
    %c2 = arith.constant 2 : index
    %c0_17 = arith.constant 0 : index
    %c0_18 = arith.constant 0 : index
    %12 = vector.load %arg2[%c0_16, %c2, %c0_17, %c0_18] : memref<1x64x4x4xf32, #tpu.memory_space<vmem>>, vector<1x1x4x4xf32>
    %13 = vector.shape_cast %12 : vector<1x1x4x4xf32> to vector<4x4xf32>
    %14 = vector.shape_cast %11 : vector<4x4xf32> to vector<1x1x4x4xf32>
    tpu.vector_store %arg2[%c0_16, %c2, %c0_17, %c0_18], %14 {strides = array<i32>} : memref<1x64x4x4xf32, #tpu.memory_space<vmem>>, vector<1x1x4x4xf32>,
    %c0_19 = arith.constant 0 : index
    %c0_20 = arith.constant 0 : index
    %c0_21 = arith.constant 0 : index
    %c12 = arith.constant 12 : index
    %15 = vector.load %arg1[%c0_19, %c0_20, %c0_21, %c12] : memref<1x4x16x16xf32, #tpu.memory_space<vmem>>, vector<1x1x4x4xf32>
    %16 = vector.shape_cast %15 : vector<1x1x4x4xf32> to vector<4x4xf32>
    %c0_22 = arith.constant 0 : index
    %c3 = arith.constant 3 : index
    %c0_23 = arith.constant 0 : index
    %c0_24 = arith.constant 0 : index
    %17 = vector.load %arg2[%c0_22, %c3, %c0_23, %c0_24] : memref<1x64x4x4xf32, #tpu.memory_space<vmem>>, vector<1x1x4x4xf32>
    %18 = vector.shape_cast %17 : vector<1x1x4x4xf32> to vector<4x4xf32>
    %19 = vector.shape_cast %16 : vector<4x4xf32> to vector<1x1x4x4xf32>
    tpu.vector_store %arg2[%c0_22, %c3, %c0_23, %c0_24], %19 {strides = array<i32>} : memref<1x64x4x4xf32, #tpu.memory_space<vmem>>, vector<1x1x4x4xf32>,
    %c0_25 = arith.constant 0 : index
    %c0_26 = arith.constant 0 : index
    %c4_27 = arith.constant 4 : index
    %c0_28 = arith.constant 0 : index
    %20 = vector.load %arg1[%c0_25, %c0_26, %c4_27, %c0_28] : memref<1x4x16x16xf32, #tpu.memory_space<vmem>>, vector<1x1x4x4xf32>
    %21 = vector.shape_cast %20 : vector<1x1x4x4xf32> to vector<4x4xf32>
    %c0_29 = arith.constant 0 : index
    %c4_30 = arith.constant 4 : index
    %c0_31 = arith.constant 0 : index
    %c0_32 = arith.constant 0 : index
    %22 = vector.load %arg2[%c0_29, %c4_30, %c0_31, %c0_32] : memref<1x64x4x4xf32, #tpu.memory_space<vmem>>, vector<1x1x4x4xf32>
    %23 = vector.shape_cast %22 : vector<1x1x4x4xf32> to vector<4x4xf32>
    %24 = vector.shape_cast %21 : vector<4x4xf32> to vector<1x1x4x4xf32>
    tpu.vector_store %arg2[%c0_29, %c4_30, %c0_31, %c0_32], %24 {strides = array<i32>} : memref<1x64x4x4xf32, #tpu.memory_space<vmem>>, vector<1x1x4x4xf32>,
    %c0_33 = arith.constant 0 : index
    %c0_34 = arith.constant 0 : index
    %c4_35 = arith.constant 4 : index
    %c4_36 = arith.constant 4 : index
    %25 = vector.load %arg1[%c0_33, %c0_34, %c4_35, %c4_36] : memref<1x4x16x16xf32, #tpu.memory_space<vmem>>, vector<1x1x4x4xf32>
    %26 = vector.shape_cast %25 : vector<1x1x4x4xf32> to vector<4x4xf32>
    %c0_37 = arith.constant 0 : index
    %c5 = arith.constant 5 : index
    %c0_38 = arith.constant 0 : index
    %c0_39 = arith.constant 0 : index
    %27 = vector.load %arg2[%c0_37, %c5, %c0_38, %c0_39] : memref<1x64x4x4xf32, #tpu.memory_space<vmem>>, vector<1x1x4x4xf32>
    %28 = vector.shape_cast %27 : vector<1x1x4x4xf32> to vector<4x4xf32>
    %29 = vector.shape_cast %26 : vector<4x4xf32> to vector<1x1x4x4xf32>
    tpu.vector_store %arg2[%c0_37, %c5, %c0_38, %c0_39], %29 {strides = array<i32>} : memref<1x64x4x4xf32, #tpu.memory_space<vmem>>, vector<1x1x4x4xf32>,
    %c0_40 = arith.constant 0 : index
    %c0_41 = arith.constant 0 : index
    %c4_42 = arith.constant 4 : index
    %c8_43 = arith.constant 8 : index
    %30 = vector.load %arg1[%c0_40, %c0_41, %c4_42, %c8_43] : memref<1x4x16x16xf32, #tpu.memory_space<vmem>>, vector<1x1x4x4xf32>
    %31 = vector.shape_cast %30 : vector<1x1x4x4xf32> to vector<4x4xf32>
    %c0_44 = arith.constant 0 : index
    %c6 = arith.constant 6 : index
    %c0_45 = arith.constant 0 : index
    %c0_46 = arith.constant 0 : index
    %32 = vector.load %arg2[%c0_44, %c6, %c0_45, %c0_46] : memref<1x64x4x4xf32, #tpu.memory_space<vmem>>, vector<1x1x4x4xf32>
    %33 = vector.shape_cast %32 : vector<1x1x4x4xf32> to vector<4x4xf32>
    %34 = vector.shape_cast %31 : vector<4x4xf32> to vector<1x1x4x4xf32>
    tpu.vector_store %arg2[%c0_44, %c6, %c0_45, %c0_46], %34 {strides = array<i32>} : memref<1x64x4x4xf32, #tpu.memory_space<vmem>>, vector<1x1x4x4xf32>,
    %c0_47 = arith.constant 0 : index
    %c0_48 = arith.constant 0 : index
    %c4_49 = arith.constant 4 : index
    %c12_50 = arith.constant 12 : index
    %35 = vector.load %arg1[%c0_47, %c0_48, %c4_49, %c12_50] : memref<1x4x16x16xf32, #tpu.memory_space<vmem>>, vector<1x1x4x4xf32>
    %36 = vector.shape_cast %35 : vector<1x1x4x4xf32> to vector<4x4xf32>
    %c0_51 = arith.constant 0 : index
    %c7 = arith.constant 7 : index
    %c0_52 = arith.constant 0 : index
    %c0_53 = arith.constant 0 : index
    %37 = vector.load %arg2[%c0_51, %c7, %c0_52, %c0_53] : memref<1x64x4x4xf32, #tpu.memory_space<vmem>>, vector<1x1x4x4xf32>
    %38 = vector.shape_cast %37 : vector<1x1x4x4xf32> to vector<4x4xf32>
    %39 = vector.shape_cast %36 : vector<4x4xf32> to vector<1x1x4x4xf32>
    tpu.vector_store %arg2[%c0_51, %c7, %c0_52, %c0_53], %39 {strides = array<i32>} : memref<1x64x4x4xf32, #tpu.memory_space<vmem>>, vector<1x1x4x4xf32>,
    %c0_54 = arith.constant 0 : index
    %c0_55 = arith.constant 0 : index
    %c8_56 = arith.constant 8 : index
    %c0_57 = arith.constant 0 : index
    %40 = vector.load %arg1[%c0_54, %c0_55, %c8_56, %c0_57] : memref<1x4x16x16xf32, #tpu.memory_space<vmem>>, vector<1x1x4x4xf32>
    %41 = vector.shape_cast %40 : vector<1x1x4x4xf32> to vector<4x4xf32>
    %c0_58 = arith.constant 0 : index
    %c8_59 = arith.constant 8 : index
    %c0_60 = arith.constant 0 : index
    %c0_61 = arith.constant 0 : index
    %42 = vector.load %arg2[%c0_58, %c8_59, %c0_60, %c0_61] : memref<1x64x4x4xf32, #tpu.memory_space<vmem>>, vector<1x1x4x4xf32>
    %43 = vector.shape_cast %42 : vector<1x1x4x4xf32> to vector<4x4xf32>
    %44 = vector.shape_cast %41 : vector<4x4xf32> to vector<1x1x4x4xf32>
    tpu.vector_store %arg2[%c0_58, %c8_59, %c0_60, %c0_61], %44 {strides = array<i32>} : memref<1x64x4x4xf32, #tpu.memory_space<vmem>>, vector<1x1x4x4xf32>,
    %c0_62 = arith.constant 0 : index
    %c0_63 = arith.constant 0 : index
    %c8_64 = arith.constant 8 : index
    %c4_65 = arith.constant 4 : index
    %45 = vector.load %arg1[%c0_62, %c0_63, %c8_64, %c4_65] : memref<1x4x16x16xf32, #tpu.memory_space<vmem>>, vector<1x1x4x4xf32>
    %46 = vector.shape_cast %45 : vector<1x1x4x4xf32> to vector<4x4xf32>
    %c0_66 = arith.constant 0 : index
    %c9 = arith.constant 9 : index
    %c0_67 = arith.constant 0 : index
    %c0_68 = arith.constant 0 : index
    %47 = vector.load %arg2[%c0_66, %c9, %c0_67, %c0_68] : memref<1x64x4x4xf32, #tpu.memory_space<vmem>>, vector<1x1x4x4xf32>
    %48 = vector.shape_cast %47 : vector<1x1x4x4xf32> to vector<4x4xf32>
    %49 = vector.shape_cast %46 : vector<4x4xf32> to vector<1x1x4x4xf32>
    tpu.vector_store %arg2[%c0_66, %c9, %c0_67, %c0_68], %49 {strides = array<i32>} : memref<1x64x4x4xf32, #tpu.memory_space<vmem>>, vector<1x1x4x4xf32>,
    %c0_69 = arith.constant 0 : index
    %c0_70 = arith.constant 0 : index
    %c8_71 = arith.constant 8 : index
    %c8_72 = arith.constant 8 : index
    %50 = vector.load %arg1[%c0_69, %c0_70, %c8_71, %c8_72] : memref<1x4x16x16xf32, #tpu.memory_space<vmem>>, vector<1x1x4x4xf32>
    %51 = vector.shape_cast %50 : vector<1x1x4x4xf32> to vector<4x4xf32>
    %c0_73 = arith.constant 0 : index
    %c10 = arith.constant 10 : index
    %c0_74 = arith.constant 0 : index
    %c0_75 = arith.constant 0 : index
    %52 = vector.load %arg2[%c0_73, %c10, %c0_74, %c0_75] : memref<1x64x4x4xf32, #tpu.memory_space<vmem>>, vector<1x1x4x4xf32>
    %53 = vector.shape_cast %52 : vector<1x1x4x4xf32> to vector<4x4xf32>
    %54 = vector.shape_cast %51 : vector<4x4xf32> to vector<1x1x4x4xf32>
    tpu.vector_store %arg2[%c0_73, %c10, %c0_74, %c0_75], %54 {strides = array<i32>} : memref<1x64x4x4xf32, #tpu.memory_space<vmem>>, vector<1x1x4x4xf32>,
    %c0_76 = arith.constant 0 : index
    %c0_77 = arith.constant 0 : index
    %c8_78 = arith.constant 8 : index
    %c12_79 = arith.constant 12 : index
    %55 = vector.load %arg1[%c0_76, %c0_77, %c8_78, %c12_79] : memref<1x4x16x16xf32, #tpu.memory_space<vmem>>, vector<1x1x4x4xf32>
    %56 = vector.shape_cast %55 : vector<1x1x4x4xf32> to vector<4x4xf32>
    %c0_80 = arith.constant 0 : index
    %c11 = arith.constant 11 : index
    %c0_81 = arith.constant 0 : index
    %c0_82 = arith.constant 0 : index
    %57 = vector.load %arg2[%c0_80, %c11, %c0_81, %c0_82] : memref<1x64x4x4xf32, #tpu.memory_space<vmem>>, vector<1x1x4x4xf32>
    %58 = vector.shape_cast %57 : vector<1x1x4x4xf32> to vector<4x4xf32>
    %59 = vector.shape_cast %56 : vector<4x4xf32> to vector<1x1x4x4xf32>
    tpu.vector_store %arg2[%c0_80, %c11, %c0_81, %c0_82], %59 {strides = array<i32>} : memref<1x64x4x4xf32, #tpu.memory_space<vmem>>, vector<1x1x4x4xf32>,
    %c0_83 = arith.constant 0 : index
    %c0_84 = arith.constant 0 : index
    %c12_85 = arith.constant 12 : index
    %c0_86 = arith.constant 0 : index
    %60 = vector.load %arg1[%c0_83, %c0_84, %c12_85, %c0_86] : memref<1x4x16x16xf32, #tpu.memory_space<vmem>>, vector<1x1x4x4xf32>
    %61 = vector.shape_cast %60 : vector<1x1x4x4xf32> to vector<4x4xf32>
    %c0_87 = arith.constant 0 : index
    %c12_88 = arith.constant 12 : index
    %c0_89 = arith.constant 0 : index
    %c0_90 = arith.constant 0 : index
    %62 = vector.load %arg2[%c0_87, %c12_88, %c0_89, %c0_90] : memref<1x64x4x4xf32, #tpu.memory_space<vmem>>, vector<1x1x4x4xf32>
    %63 = vector.shape_cast %62 : vector<1x1x4x4xf32> to vector<4x4xf32>
    %64 = vector.shape_cast %61 : vector<4x4xf32> to vector<1x1x4x4xf32>
    tpu.vector_store %arg2[%c0_87, %c12_88, %c0_89, %c0_90], %64 {strides = array<i32>} : memref<1x64x4x4xf32, #tpu.memory_space<vmem>>, vector<1x1x4x4xf32>,
    %c0_91 = arith.constant 0 : index
    %c0_92 = arith.constant 0 : index
    %c12_93 = arith.constant 12 : index
    %c4_94 = arith.constant 4 : index
    %65 = vector.load %arg1[%c0_91, %c0_92, %c12_93, %c4_94] : memref<1x4x16x16xf32, #tpu.memory_space<vmem>>, vector<1x1x4x4xf32>
    %66 = vector.shape_cast %65 : vector<1x1x4x4xf32> to vector<4x4xf32>
    %c0_95 = arith.constant 0 : index
    %c13 = arith.constant 13 : index
    %c0_96 = arith.constant 0 : index
    %c0_97 = arith.constant 0 : index
    %67 = vector.load %arg2[%c0_95, %c13, %c0_96, %c0_97] : memref<1x64x4x4xf32, #tpu.memory_space<vmem>>, vector<1x1x4x4xf32>
    %68 = vector.shape_cast %67 : vector<1x1x4x4xf32> to vector<4x4xf32>
    %69 = vector.shape_cast %66 : vector<4x4xf32> to vector<1x1x4x4xf32>
    tpu.vector_store %arg2[%c0_95, %c13, %c0_96, %c0_97], %69 {strides = array<i32>} : memref<1x64x4x4xf32, #tpu.memory_space<vmem>>, vector<1x1x4x4xf32>,
    %c0_98 = arith.constant 0 : index
    %c0_99 = arith.constant 0 : index
    %c12_100 = arith.constant 12 : index
    %c8_101 = arith.constant 8 : index
    %70 = vector.load %arg1[%c0_98, %c0_99, %c12_100, %c8_101] : memref<1x4x16x16xf32, #tpu.memory_space<vmem>>, vector<1x1x4x4xf32>
    %71 = vector.shape_cast %70 : vector<1x1x4x4xf32> to vector<4x4xf32>
    %c0_102 = arith.constant 0 : index
    %c14 = arith.constant 14 : index
    %c0_103 = arith.constant 0 : index
    %c0_104 = arith.constant 0 : index
    %72 = vector.load %arg2[%c0_102, %c14, %c0_103, %c0_104] : memref<1x64x4x4xf32, #tpu.memory_space<vmem>>, vector<1x1x4x4xf32>
    %73 = vector.shape_cast %72 : vector<1x1x4x4xf32> to vector<4x4xf32>
    %74 = vector.shape_cast %71 : vector<4x4xf32> to vector<1x1x4x4xf32>
    tpu.vector_store %arg2[%c0_102, %c14, %c0_103, %c0_104], %74 {strides = array<i32>} : memref<1x64x4x4xf32, #tpu.memory_space<vmem>>, vector<1x1x4x4xf32>,
    %c0_105 = arith.constant 0 : index
    %c0_106 = arith.constant 0 : index
    %c12_107 = arith.constant 12 : index
    %c12_108 = arith.constant 12 : index
    %75 = vector.load %arg1[%c0_105, %c0_106, %c12_107, %c12_108] : memref<1x4x16x16xf32, #tpu.memory_space<vmem>>, vector<1x1x4x4xf32>
    %76 = vector.shape_cast %75 : vector<1x1x4x4xf32> to vector<4x4xf32>
    %c0_109 = arith.constant 0 : index
    %c15 = arith.constant 15 : index
    %c0_110 = arith.constant 0 : index
    %c0_111 = arith.constant 0 : index
    %77 = vector.load %arg2[%c0_109, %c15, %c0_110, %c0_111] : memref<1x64x4x4xf32, #tpu.memory_space<vmem>>, vector<1x1x4x4xf32>
    %78 = vector.shape_cast %77 : vector<1x1x4x4xf32> to vector<4x4xf32>
    %79 = vector.shape_cast %76 : vector<4x4xf32> to vector<1x1x4x4xf32>
    tpu.vector_store %arg2[%c0_109, %c15, %c0_110, %c0_111], %79 {strides = array<i32>} : memref<1x64x4x4xf32, #tpu.memory_space<vmem>>, vector<1x1x4x4xf32>,
    %c0_112 = arith.constant 0 : index
    %c1_113 = arith.constant 1 : index
    %c0_114 = arith.constant 0 : index
    %c0_115 = arith.constant 0 : index
    %80 = vector.load %arg1[%c0_112, %c1_113, %c0_114, %c0_115] : memref<1x4x16x16xf32, #tpu.memory_space<vmem>>, vector<1x1x4x4xf32>
    %81 = vector.shape_cast %80 : vector<1x1x4x4xf32> to vector<4x4xf32>
    %c0_116 = arith.constant 0 : index
    %c16 = arith.constant 16 : index
    %c0_117 = arith.constant 0 : index
    %c0_118 = arith.constant 0 : index
    %82 = vector.load %arg2[%c0_116, %c16, %c0_117, %c0_118] : memref<1x64x4x4xf32, #tpu.memory_space<vmem>>, vector<1x1x4x4xf32>
    %83 = vector.shape_cast %82 : vector<1x1x4x4xf32> to vector<4x4xf32>
    %84 = vector.shape_cast %81 : vector<4x4xf32> to vector<1x1x4x4xf32>
    tpu.vector_store %arg2[%c0_116, %c16, %c0_117, %c0_118], %84 {strides = array<i32>} : memref<1x64x4x4xf32, #tpu.memory_space<vmem>>, vector<1x1x4x4xf32>,
    %c0_119 = arith.constant 0 : index
    %c1_120 = arith.constant 1 : index
    %c0_121 = arith.constant 0 : index
    %c4_122 = arith.constant 4 : index
    %85 = vector.load %arg1[%c0_119, %c1_120, %c0_121, %c4_122] : memref<1x4x16x16xf32, #tpu.memory_space<vmem>>, vector<1x1x4x4xf32>
    %86 = vector.shape_cast %85 : vector<1x1x4x4xf32> to vector<4x4xf32>
    %c0_123 = arith.constant 0 : index
    %c17 = arith.constant 17 : index
    %c0_124 = arith.constant 0 : index
    %c0_125 = arith.constant 0 : index
    %87 = vector.load %arg2[%c0_123, %c17, %c0_124, %c0_125] : memref<1x64x4x4xf32, #tpu.memory_space<vmem>>, vector<1x1x4x4xf32>
    %88 = vector.shape_cast %87 : vector<1x1x4x4xf32> to vector<4x4xf32>
    %89 = vector.shape_cast %86 : vector<4x4xf32> to vector<1x1x4x4xf32>
    tpu.vector_store %arg2[%c0_123, %c17, %c0_124, %c0_125], %89 {strides = array<i32>} : memref<1x64x4x4xf32, #tpu.memory_space<vmem>>, vector<1x1x4x4xf32>,
    %c0_126 = arith.constant 0 : index
    %c1_127 = arith.constant 1 : index
    %c0_128 = arith.constant 0 : index
    %c8_129 = arith.constant 8 : index
    %90 = vector.load %arg1[%c0_126, %c1_127, %c0_128, %c8_129] : memref<1x4x16x16xf32, #tpu.memory_space<vmem>>, vector<1x1x4x4xf32>
    %91 = vector.shape_cast %90 : vector<1x1x4x4xf32> to vector<4x4xf32>
    %c0_130 = arith.constant 0 : index
    %c18 = arith.constant 18 : index
    %c0_131 = arith.constant 0 : index
    %c0_132 = arith.constant 0 : index
    %92 = vector.load %arg2[%c0_130, %c18, %c0_131, %c0_132] : memref<1x64x4x4xf32, #tpu.memory_space<vmem>>, vector<1x1x4x4xf32>
    %93 = vector.shape_cast %92 : vector<1x1x4x4xf32> to vector<4x4xf32>
    %94 = vector.shape_cast %91 : vector<4x4xf32> to vector<1x1x4x4xf32>
    tpu.vector_store %arg2[%c0_130, %c18, %c0_131, %c0_132], %94 {strides = array<i32>} : memref<1x64x4x4xf32, #tpu.memory_space<vmem>>, vector<1x1x4x4xf32>,
    %c0_133 = arith.constant 0 : index
    %c1_134 = arith.constant 1 : index
    %c0_135 = arith.constant 0 : index
    %c12_136 = arith.constant 12 : index
    %95 = vector.load %arg1[%c0_133, %c1_134, %c0_135, %c12_136] : memref<1x4x16x16xf32, #tpu.memory_space<vmem>>, vector<1x1x4x4xf32>
    %96 = vector.shape_cast %95 : vector<1x1x4x4xf32> to vector<4x4xf32>
    %c0_137 = arith.constant 0 : index
    %c19 = arith.constant 19 : index
    %c0_138 = arith.constant 0 : index
    %c0_139 = arith.constant 0 : index
    %97 = vector.load %arg2[%c0_137, %c19, %c0_138, %c0_139] : memref<1x64x4x4xf32, #tpu.memory_space<vmem>>, vector<1x1x4x4xf32>
    %98 = vector.shape_cast %97 : vector<1x1x4x4xf32> to vector<4x4xf32>
    %99 = vector.shape_cast %96 : vector<4x4xf32> to vector<1x1x4x4xf32>
    tpu.vector_store %arg2[%c0_137, %c19, %c0_138, %c0_139], %99 {strides = array<i32>} : memref<1x64x4x4xf32, #tpu.memory_space<vmem>>, vector<1x1x4x4xf32>,
    %c0_140 = arith.constant 0 : index
    %c1_141 = arith.constant 1 : index
    %c4_142 = arith.constant 4 : index
    %c0_143 = arith.constant 0 : index
    %100 = vector.load %arg1[%c0_140, %c1_141, %c4_142, %c0_143] : memref<1x4x16x16xf32, #tpu.memory_space<vmem>>, vector<1x1x4x4xf32>
    %101 = vector.shape_cast %100 : vector<1x1x4x4xf32> to vector<4x4xf32>
    %c0_144 = arith.constant 0 : index
    %c20 = arith.constant 20 : index
    %c0_145 = arith.constant 0 : index
    %c0_146 = arith.constant 0 : index
    %102 = vector.load %arg2[%c0_144, %c20, %c0_145, %c0_146] : memref<1x64x4x4xf32, #tpu.memory_space<vmem>>, vector<1x1x4x4xf32>
    %103 = vector.shape_cast %102 : vector<1x1x4x4xf32> to vector<4x4xf32>
    %104 = vector.shape_cast %101 : vector<4x4xf32> to vector<1x1x4x4xf32>
    tpu.vector_store %arg2[%c0_144, %c20, %c0_145, %c0_146], %104 {strides = array<i32>} : memref<1x64x4x4xf32, #tpu.memory_space<vmem>>, vector<1x1x4x4xf32>,
    %c0_147 = arith.constant 0 : index
    %c1_148 = arith.constant 1 : index
    %c4_149 = arith.constant 4 : index
    %c4_150 = arith.constant 4 : index
    %105 = vector.load %arg1[%c0_147, %c1_148, %c4_149, %c4_150] : memref<1x4x16x16xf32, #tpu.memory_space<vmem>>, vector<1x1x4x4xf32>
    %106 = vector.shape_cast %105 : vector<1x1x4x4xf32> to vector<4x4xf32>
    %c0_151 = arith.constant 0 : index
    %c21 = arith.constant 21 : index
    %c0_152 = arith.constant 0 : index
    %c0_153 = arith.constant 0 : index
    %107 = vector.load %arg2[%c0_151, %c21, %c0_152, %c0_153] : memref<1x64x4x4xf32, #tpu.memory_space<vmem>>, vector<1x1x4x4xf32>
    %108 = vector.shape_cast %107 : vector<1x1x4x4xf32> to vector<4x4xf32>
    %109 = vector.shape_cast %106 : vector<4x4xf32> to vector<1x1x4x4xf32>
    tpu.vector_store %arg2[%c0_151, %c21, %c0_152, %c0_153], %109 {strides = array<i32>} : memref<1x64x4x4xf32, #tpu.memory_space<vmem>>, vector<1x1x4x4xf32>,
    %c0_154 = arith.constant 0 : index
    %c1_155 = arith.constant 1 : index
    %c4_156 = arith.constant 4 : index
    %c8_157 = arith.constant 8 : index
    %110 = vector.load %arg1[%c0_154, %c1_155, %c4_156, %c8_157] : memref<1x4x16x16xf32, #tpu.memory_space<vmem>>, vector<1x1x4x4xf32>
    %111 = vector.shape_cast %110 : vector<1x1x4x4xf32> to vector<4x4xf32>
    %c0_158 = arith.constant 0 : index
    %c22 = arith.constant 22 : index
    %c0_159 = arith.constant 0 : index
    %c0_160 = arith.constant 0 : index
    %112 = vector.load %arg2[%c0_158, %c22, %c0_159, %c0_160] : memref<1x64x4x4xf32, #tpu.memory_space<vmem>>, vector<1x1x4x4xf32>
    %113 = vector.shape_cast %112 : vector<1x1x4x4xf32> to vector<4x4xf32>
    %114 = vector.shape_cast %111 : vector<4x4xf32> to vector<1x1x4x4xf32>
    tpu.vector_store %arg2[%c0_158, %c22, %c0_159, %c0_160], %114 {strides = array<i32>} : memref<1x64x4x4xf32, #tpu.memory_space<vmem>>, vector<1x1x4x4xf32>,
    %c0_161 = arith.constant 0 : index
    %c1_162 = arith.constant 1 : index
    %c4_163 = arith.constant 4 : index
    %c12_164 = arith.constant 12 : index
    %115 = vector.load %arg1[%c0_161, %c1_162, %c4_163, %c12_164] : memref<1x4x16x16xf32, #tpu.memory_space<vmem>>, vector<1x1x4x4xf32>
    %116 = vector.shape_cast %115 : vector<1x1x4x4xf32> to vector<4x4xf32>
    %c0_165 = arith.constant 0 : index
    %c23 = arith.constant 23 : index
    %c0_166 = arith.constant 0 : index
    %c0_167 = arith.constant 0 : index
    %117 = vector.load %arg2[%c0_165, %c23, %c0_166, %c0_167] : memref<1x64x4x4xf32, #tpu.memory_space<vmem>>, vector<1x1x4x4xf32>
    %118 = vector.shape_cast %117 : vector<1x1x4x4xf32> to vector<4x4xf32>
    %119 = vector.shape_cast %116 : vector<4x4xf32> to vector<1x1x4x4xf32>
    tpu.vector_store %arg2[%c0_165, %c23, %c0_166, %c0_167], %119 {strides = array<i32>} : memref<1x64x4x4xf32, #tpu.memory_space<vmem>>, vector<1x1x4x4xf32>,
    %c0_168 = arith.constant 0 : index
    %c1_169 = arith.constant 1 : index
    %c8_170 = arith.constant 8 : index
    %c0_171 = arith.constant 0 : index
    %120 = vector.load %arg1[%c0_168, %c1_169, %c8_170, %c0_171] : memref<1x4x16x16xf32, #tpu.memory_space<vmem>>, vector<1x1x4x4xf32>
    %121 = vector.shape_cast %120 : vector<1x1x4x4xf32> to vector<4x4xf32>
    %c0_172 = arith.constant 0 : index
    %c24 = arith.constant 24 : index
    %c0_173 = arith.constant 0 : index
    %c0_174 = arith.constant 0 : index
    %122 = vector.load %arg2[%c0_172, %c24, %c0_173, %c0_174] : memref<1x64x4x4xf32, #tpu.memory_space<vmem>>, vector<1x1x4x4xf32>
    %123 = vector.shape_cast %122 : vector<1x1x4x4xf32> to vector<4x4xf32>
    %124 = vector.shape_cast %121 : vector<4x4xf32> to vector<1x1x4x4xf32>
    tpu.vector_store %arg2[%c0_172, %c24, %c0_173, %c0_174], %124 {strides = array<i32>} : memref<1x64x4x4xf32, #tpu.memory_space<vmem>>, vector<1x1x4x4xf32>,
    %c0_175 = arith.constant 0 : index
    %c1_176 = arith.constant 1 : index
    %c8_177 = arith.constant 8 : index
    %c4_178 = arith.constant 4 : index
    %125 = vector.load %arg1[%c0_175, %c1_176, %c8_177, %c4_178] : memref<1x4x16x16xf32, #tpu.memory_space<vmem>>, vector<1x1x4x4xf32>
    %126 = vector.shape_cast %125 : vector<1x1x4x4xf32> to vector<4x4xf32>
    %c0_179 = arith.constant 0 : index
    %c25 = arith.constant 25 : index
    %c0_180 = arith.constant 0 : index
    %c0_181 = arith.constant 0 : index
    %127 = vector.load %arg2[%c0_179, %c25, %c0_180, %c0_181] : memref<1x64x4x4xf32, #tpu.memory_space<vmem>>, vector<1x1x4x4xf32>
    %128 = vector.shape_cast %127 : vector<1x1x4x4xf32> to vector<4x4xf32>
    %129 = vector.shape_cast %126 : vector<4x4xf32> to vector<1x1x4x4xf32>
    tpu.vector_store %arg2[%c0_179, %c25, %c0_180, %c0_181], %129 {strides = array<i32>} : memref<1x64x4x4xf32, #tpu.memory_space<vmem>>, vector<1x1x4x4xf32>,
    %c0_182 = arith.constant 0 : index
    %c1_183 = arith.constant 1 : index
    %c8_184 = arith.constant 8 : index
    %c8_185 = arith.constant 8 : index
    %130 = vector.load %arg1[%c0_182, %c1_183, %c8_184, %c8_185] : memref<1x4x16x16xf32, #tpu.memory_space<vmem>>, vector<1x1x4x4xf32>
    %131 = vector.shape_cast %130 : vector<1x1x4x4xf32> to vector<4x4xf32>
    %c0_186 = arith.constant 0 : index
    %c26 = arith.constant 26 : index
    %c0_187 = arith.constant 0 : index
    %c0_188 = arith.constant 0 : index
    %132 = vector.load %arg2[%c0_186, %c26, %c0_187, %c0_188] : memref<1x64x4x4xf32, #tpu.memory_space<vmem>>, vector<1x1x4x4xf32>
    %133 = vector.shape_cast %132 : vector<1x1x4x4xf32> to vector<4x4xf32>
    %134 = vector.shape_cast %131 : vector<4x4xf32> to vector<1x1x4x4xf32>
    tpu.vector_store %arg2[%c0_186, %c26, %c0_187, %c0_188], %134 {strides = array<i32>} : memref<1x64x4x4xf32, #tpu.memory_space<vmem>>, vector<1x1x4x4xf32>,
    %c0_189 = arith.constant 0 : index
    %c1_190 = arith.constant 1 : index
    %c8_191 = arith.constant 8 : index
    %c12_192 = arith.constant 12 : index
    %135 = vector.load %arg1[%c0_189, %c1_190, %c8_191, %c12_192] : memref<1x4x16x16xf32, #tpu.memory_space<vmem>>, vector<1x1x4x4xf32>
    %136 = vector.shape_cast %135 : vector<1x1x4x4xf32> to vector<4x4xf32>
    %c0_193 = arith.constant 0 : index
    %c27 = arith.constant 27 : index
    %c0_194 = arith.constant 0 : index
    %c0_195 = arith.constant 0 : index
    %137 = vector.load %arg2[%c0_193, %c27, %c0_194, %c0_195] : memref<1x64x4x4xf32, #tpu.memory_space<vmem>>, vector<1x1x4x4xf32>
    %138 = vector.shape_cast %137 : vector<1x1x4x4xf32> to vector<4x4xf32>
    %139 = vector.shape_cast %136 : vector<4x4xf32> to vector<1x1x4x4xf32>
    tpu.vector_store %arg2[%c0_193, %c27, %c0_194, %c0_195], %139 {strides = array<i32>} : memref<1x64x4x4xf32, #tpu.memory_space<vmem>>, vector<1x1x4x4xf32>,
    %c0_196 = arith.constant 0 : index
    %c1_197 = arith.constant 1 : index
    %c12_198 = arith.constant 12 : index
    %c0_199 = arith.constant 0 : index
    %140 = vector.load %arg1[%c0_196, %c1_197, %c12_198, %c0_199] : memref<1x4x16x16xf32, #tpu.memory_space<vmem>>, vector<1x1x4x4xf32>
    %141 = vector.shape_cast %140 : vector<1x1x4x4xf32> to vector<4x4xf32>
    %c0_200 = arith.constant 0 : index
    %c28 = arith.constant 28 : index
    %c0_201 = arith.constant 0 : index
    %c0_202 = arith.constant 0 : index
    %142 = vector.load %arg2[%c0_200, %c28, %c0_201, %c0_202] : memref<1x64x4x4xf32, #tpu.memory_space<vmem>>, vector<1x1x4x4xf32>
    %143 = vector.shape_cast %142 : vector<1x1x4x4xf32> to vector<4x4xf32>
    %144 = vector.shape_cast %141 : vector<4x4xf32> to vector<1x1x4x4xf32>
    tpu.vector_store %arg2[%c0_200, %c28, %c0_201, %c0_202], %144 {strides = array<i32>} : memref<1x64x4x4xf32, #tpu.memory_space<vmem>>, vector<1x1x4x4xf32>,
    %c0_203 = arith.constant 0 : index
    %c1_204 = arith.constant 1 : index
    %c12_205 = arith.constant 12 : index
    %c4_206 = arith.constant 4 : index
    %145 = vector.load %arg1[%c0_203, %c1_204, %c12_205, %c4_206] : memref<1x4x16x16xf32, #tpu.memory_space<vmem>>, vector<1x1x4x4xf32>
    %146 = vector.shape_cast %145 : vector<1x1x4x4xf32> to vector<4x4xf32>
    %c0_207 = arith.constant 0 : index
    %c29 = arith.constant 29 : index
    %c0_208 = arith.constant 0 : index
    %c0_209 = arith.constant 0 : index
    %147 = vector.load %arg2[%c0_207, %c29, %c0_208, %c0_209] : memref<1x64x4x4xf32, #tpu.memory_space<vmem>>, vector<1x1x4x4xf32>
    %148 = vector.shape_cast %147 : vector<1x1x4x4xf32> to vector<4x4xf32>
    %149 = vector.shape_cast %146 : vector<4x4xf32> to vector<1x1x4x4xf32>
    tpu.vector_store %arg2[%c0_207, %c29, %c0_208, %c0_209], %149 {strides = array<i32>} : memref<1x64x4x4xf32, #tpu.memory_space<vmem>>, vector<1x1x4x4xf32>,
    %c0_210 = arith.constant 0 : index
    %c1_211 = arith.constant 1 : index
    %c12_212 = arith.constant 12 : index
    %c8_213 = arith.constant 8 : index
    %150 = vector.load %arg1[%c0_210, %c1_211, %c12_212, %c8_213] : memref<1x4x16x16xf32, #tpu.memory_space<vmem>>, vector<1x1x4x4xf32>
    %151 = vector.shape_cast %150 : vector<1x1x4x4xf32> to vector<4x4xf32>
    %c0_214 = arith.constant 0 : index
    %c30 = arith.constant 30 : index
    %c0_215 = arith.constant 0 : index
    %c0_216 = arith.constant 0 : index
    %152 = vector.load %arg2[%c0_214, %c30, %c0_215, %c0_216] : memref<1x64x4x4xf32, #tpu.memory_space<vmem>>, vector<1x1x4x4xf32>
    %153 = vector.shape_cast %152 : vector<1x1x4x4xf32> to vector<4x4xf32>
    %154 = vector.shape_cast %151 : vector<4x4xf32> to vector<1x1x4x4xf32>
    tpu.vector_store %arg2[%c0_214, %c30, %c0_215, %c0_216], %154 {strides = array<i32>} : memref<1x64x4x4xf32, #tpu.memory_space<vmem>>, vector<1x1x4x4xf32>,
    %c0_217 = arith.constant 0 : index
    %c1_218 = arith.constant 1 : index
    %c12_219 = arith.constant 12 : index
    %c12_220 = arith.constant 12 : index
    %155 = vector.load %arg1[%c0_217, %c1_218, %c12_219, %c12_220] : memref<1x4x16x16xf32, #tpu.memory_space<vmem>>, vector<1x1x4x4xf32>
    %156 = vector.shape_cast %155 : vector<1x1x4x4xf32> to vector<4x4xf32>
    %c0_221 = arith.constant 0 : index
    %c31 = arith.constant 31 : index
    %c0_222 = arith.constant 0 : index
    %c0_223 = arith.constant 0 : index
    %157 = vector.load %arg2[%c0_221, %c31, %c0_222, %c0_223] : memref<1x64x4x4xf32, #tpu.memory_space<vmem>>, vector<1x1x4x4xf32>
    %158 = vector.shape_cast %157 : vector<1x1x4x4xf32> to vector<4x4xf32>
    %159 = vector.shape_cast %156 : vector<4x4xf32> to vector<1x1x4x4xf32>
    tpu.vector_store %arg2[%c0_221, %c31, %c0_222, %c0_223], %159 {strides = array<i32>} : memref<1x64x4x4xf32, #tpu.memory_space<vmem>>, vector<1x1x4x4xf32>,
    %c0_224 = arith.constant 0 : index
    %c2_225 = arith.constant 2 : index
    %c0_226 = arith.constant 0 : index
    %c0_227 = arith.constant 0 : index
    %160 = vector.load %arg1[%c0_224, %c2_225, %c0_226, %c0_227] : memref<1x4x16x16xf32, #tpu.memory_space<vmem>>, vector<1x1x4x4xf32>
    %161 = vector.shape_cast %160 : vector<1x1x4x4xf32> to vector<4x4xf32>
    %c0_228 = arith.constant 0 : index
    %c32 = arith.constant 32 : index
    %c0_229 = arith.constant 0 : index
    %c0_230 = arith.constant 0 : index
    %162 = vector.load %arg2[%c0_228, %c32, %c0_229, %c0_230] : memref<1x64x4x4xf32, #tpu.memory_space<vmem>>, vector<1x1x4x4xf32>
    %163 = vector.shape_cast %162 : vector<1x1x4x4xf32> to vector<4x4xf32>
    %164 = vector.shape_cast %161 : vector<4x4xf32> to vector<1x1x4x4xf32>
    tpu.vector_store %arg2[%c0_228, %c32, %c0_229, %c0_230], %164 {strides = array<i32>} : memref<1x64x4x4xf32, #tpu.memory_space<vmem>>, vector<1x1x4x4xf32>,
    %c0_231 = arith.constant 0 : index
    %c2_232 = arith.constant 2 : index
    %c0_233 = arith.constant 0 : index
    %c4_234 = arith.constant 4 : index
    %165 = vector.load %arg1[%c0_231, %c2_232, %c0_233, %c4_234] : memref<1x4x16x16xf32, #tpu.memory_space<vmem>>, vector<1x1x4x4xf32>
    %166 = vector.shape_cast %165 : vector<1x1x4x4xf32> to vector<4x4xf32>
    %c0_235 = arith.constant 0 : index
    %c33 = arith.constant 33 : index
    %c0_236 = arith.constant 0 : index
    %c0_237 = arith.constant 0 : index
    %167 = vector.load %arg2[%c0_235, %c33, %c0_236, %c0_237] : memref<1x64x4x4xf32, #tpu.memory_space<vmem>>, vector<1x1x4x4xf32>
    %168 = vector.shape_cast %167 : vector<1x1x4x4xf32> to vector<4x4xf32>
    %169 = vector.shape_cast %166 : vector<4x4xf32> to vector<1x1x4x4xf32>
    tpu.vector_store %arg2[%c0_235, %c33, %c0_236, %c0_237], %169 {strides = array<i32>} : memref<1x64x4x4xf32, #tpu.memory_space<vmem>>, vector<1x1x4x4xf32>,
    %c0_238 = arith.constant 0 : index
    %c2_239 = arith.constant 2 : index
    %c0_240 = arith.constant 0 : index
    %c8_241 = arith.constant 8 : index
    %170 = vector.load %arg1[%c0_238, %c2_239, %c0_240, %c8_241] : memref<1x4x16x16xf32, #tpu.memory_space<vmem>>, vector<1x1x4x4xf32>
    %171 = vector.shape_cast %170 : vector<1x1x4x4xf32> to vector<4x4xf32>
    %c0_242 = arith.constant 0 : index
    %c34 = arith.constant 34 : index
    %c0_243 = arith.constant 0 : index
    %c0_244 = arith.constant 0 : index
    %172 = vector.load %arg2[%c0_242, %c34, %c0_243, %c0_244] : memref<1x64x4x4xf32, #tpu.memory_space<vmem>>, vector<1x1x4x4xf32>
    %173 = vector.shape_cast %172 : vector<1x1x4x4xf32> to vector<4x4xf32>
    %174 = vector.shape_cast %171 : vector<4x4xf32> to vector<1x1x4x4xf32>
    tpu.vector_store %arg2[%c0_242, %c34, %c0_243, %c0_244], %174 {strides = array<i32>} : memref<1x64x4x4xf32, #tpu.memory_space<vmem>>, vector<1x1x4x4xf32>,
    %c0_245 = arith.constant 0 : index
    %c2_246 = arith.constant 2 : index
    %c0_247 = arith.constant 0 : index
    %c12_248 = arith.constant 12 : index
    %175 = vector.load %arg1[%c0_245, %c2_246, %c0_247, %c12_248] : memref<1x4x16x16xf32, #tpu.memory_space<vmem>>, vector<1x1x4x4xf32>
    %176 = vector.shape_cast %175 : vector<1x1x4x4xf32> to vector<4x4xf32>
    %c0_249 = arith.constant 0 : index
    %c35 = arith.constant 35 : index
    %c0_250 = arith.constant 0 : index
    %c0_251 = arith.constant 0 : index
    %177 = vector.load %arg2[%c0_249, %c35, %c0_250, %c0_251] : memref<1x64x4x4xf32, #tpu.memory_space<vmem>>, vector<1x1x4x4xf32>
    %178 = vector.shape_cast %177 : vector<1x1x4x4xf32> to vector<4x4xf32>
    %179 = vector.shape_cast %176 : vector<4x4xf32> to vector<1x1x4x4xf32>
    tpu.vector_store %arg2[%c0_249, %c35, %c0_250, %c0_251], %179 {strides = array<i32>} : memref<1x64x4x4xf32, #tpu.memory_space<vmem>>, vector<1x1x4x4xf32>,
    %c0_252 = arith.constant 0 : index
    %c2_253 = arith.constant 2 : index
    %c4_254 = arith.constant 4 : index
    %c0_255 = arith.constant 0 : index
    %180 = vector.load %arg1[%c0_252, %c2_253, %c4_254, %c0_255] : memref<1x4x16x16xf32, #tpu.memory_space<vmem>>, vector<1x1x4x4xf32>
    %181 = vector.shape_cast %180 : vector<1x1x4x4xf32> to vector<4x4xf32>
    %c0_256 = arith.constant 0 : index
    %c36 = arith.constant 36 : index
    %c0_257 = arith.constant 0 : index
    %c0_258 = arith.constant 0 : index
    %182 = vector.load %arg2[%c0_256, %c36, %c0_257, %c0_258] : memref<1x64x4x4xf32, #tpu.memory_space<vmem>>, vector<1x1x4x4xf32>
    %183 = vector.shape_cast %182 : vector<1x1x4x4xf32> to vector<4x4xf32>
    %184 = vector.shape_cast %181 : vector<4x4xf32> to vector<1x1x4x4xf32>
    tpu.vector_store %arg2[%c0_256, %c36, %c0_257, %c0_258], %184 {strides = array<i32>} : memref<1x64x4x4xf32, #tpu.memory_space<vmem>>, vector<1x1x4x4xf32>,
    %c0_259 = arith.constant 0 : index
    %c2_260 = arith.constant 2 : index
    %c4_261 = arith.constant 4 : index
    %c4_262 = arith.constant 4 : index
    %185 = vector.load %arg1[%c0_259, %c2_260, %c4_261, %c4_262] : memref<1x4x16x16xf32, #tpu.memory_space<vmem>>, vector<1x1x4x4xf32>
    %186 = vector.shape_cast %185 : vector<1x1x4x4xf32> to vector<4x4xf32>
    %c0_263 = arith.constant 0 : index
    %c37 = arith.constant 37 : index
    %c0_264 = arith.constant 0 : index
    %c0_265 = arith.constant 0 : index
    %187 = vector.load %arg2[%c0_263, %c37, %c0_264, %c0_265] : memref<1x64x4x4xf32, #tpu.memory_space<vmem>>, vector<1x1x4x4xf32>
    %188 = vector.shape_cast %187 : vector<1x1x4x4xf32> to vector<4x4xf32>
    %189 = vector.shape_cast %186 : vector<4x4xf32> to vector<1x1x4x4xf32>
    tpu.vector_store %arg2[%c0_263, %c37, %c0_264, %c0_265], %189 {strides = array<i32>} : memref<1x64x4x4xf32, #tpu.memory_space<vmem>>, vector<1x1x4x4xf32>,
    %c0_266 = arith.constant 0 : index
    %c2_267 = arith.constant 2 : index
    %c4_268 = arith.constant 4 : index
    %c8_269 = arith.constant 8 : index
    %190 = vector.load %arg1[%c0_266, %c2_267, %c4_268, %c8_269] : memref<1x4x16x16xf32, #tpu.memory_space<vmem>>, vector<1x1x4x4xf32>
    %191 = vector.shape_cast %190 : vector<1x1x4x4xf32> to vector<4x4xf32>
    %c0_270 = arith.constant 0 : index
    %c38 = arith.constant 38 : index
    %c0_271 = arith.constant 0 : index
    %c0_272 = arith.constant 0 : index
    %192 = vector.load %arg2[%c0_270, %c38, %c0_271, %c0_272] : memref<1x64x4x4xf32, #tpu.memory_space<vmem>>, vector<1x1x4x4xf32>
    %193 = vector.shape_cast %192 : vector<1x1x4x4xf32> to vector<4x4xf32>
    %194 = vector.shape_cast %191 : vector<4x4xf32> to vector<1x1x4x4xf32>
    tpu.vector_store %arg2[%c0_270, %c38, %c0_271, %c0_272], %194 {strides = array<i32>} : memref<1x64x4x4xf32, #tpu.memory_space<vmem>>, vector<1x1x4x4xf32>,
    %c0_273 = arith.constant 0 : index
    %c2_274 = arith.constant 2 : index
    %c4_275 = arith.constant 4 : index
    %c12_276 = arith.constant 12 : index
    %195 = vector.load %arg1[%c0_273, %c2_274, %c4_275, %c12_276] : memref<1x4x16x16xf32, #tpu.memory_space<vmem>>, vector<1x1x4x4xf32>
    %196 = vector.shape_cast %195 : vector<1x1x4x4xf32> to vector<4x4xf32>
    %c0_277 = arith.constant 0 : index
    %c39 = arith.constant 39 : index
    %c0_278 = arith.constant 0 : index
    %c0_279 = arith.constant 0 : index
    %197 = vector.load %arg2[%c0_277, %c39, %c0_278, %c0_279] : memref<1x64x4x4xf32, #tpu.memory_space<vmem>>, vector<1x1x4x4xf32>
    %198 = vector.shape_cast %197 : vector<1x1x4x4xf32> to vector<4x4xf32>
    %199 = vector.shape_cast %196 : vector<4x4xf32> to vector<1x1x4x4xf32>
    tpu.vector_store %arg2[%c0_277, %c39, %c0_278, %c0_279], %199 {strides = array<i32>} : memref<1x64x4x4xf32, #tpu.memory_space<vmem>>, vector<1x1x4x4xf32>,
    %c0_280 = arith.constant 0 : index
    %c2_281 = arith.constant 2 : index
    %c8_282 = arith.constant 8 : index
    %c0_283 = arith.constant 0 : index
    %200 = vector.load %arg1[%c0_280, %c2_281, %c8_282, %c0_283] : memref<1x4x16x16xf32, #tpu.memory_space<vmem>>, vector<1x1x4x4xf32>
    %201 = vector.shape_cast %200 : vector<1x1x4x4xf32> to vector<4x4xf32>
    %c0_284 = arith.constant 0 : index
    %c40 = arith.constant 40 : index
    %c0_285 = arith.constant 0 : index
    %c0_286 = arith.constant 0 : index
    %202 = vector.load %arg2[%c0_284, %c40, %c0_285, %c0_286] : memref<1x64x4x4xf32, #tpu.memory_space<vmem>>, vector<1x1x4x4xf32>
    %203 = vector.shape_cast %202 : vector<1x1x4x4xf32> to vector<4x4xf32>
    %204 = vector.shape_cast %201 : vector<4x4xf32> to vector<1x1x4x4xf32>
    tpu.vector_store %arg2[%c0_284, %c40, %c0_285, %c0_286], %204 {strides = array<i32>} : memref<1x64x4x4xf32, #tpu.memory_space<vmem>>, vector<1x1x4x4xf32>,
    %c0_287 = arith.constant 0 : index
    %c2_288 = arith.constant 2 : index
    %c8_289 = arith.constant 8 : index
    %c4_290 = arith.constant 4 : index
    %205 = vector.load %arg1[%c0_287, %c2_288, %c8_289, %c4_290] : memref<1x4x16x16xf32, #tpu.memory_space<vmem>>, vector<1x1x4x4xf32>
    %206 = vector.shape_cast %205 : vector<1x1x4x4xf32> to vector<4x4xf32>
    %c0_291 = arith.constant 0 : index
    %c41 = arith.constant 41 : index
    %c0_292 = arith.constant 0 : index
    %c0_293 = arith.constant 0 : index
    %207 = vector.load %arg2[%c0_291, %c41, %c0_292, %c0_293] : memref<1x64x4x4xf32, #tpu.memory_space<vmem>>, vector<1x1x4x4xf32>
    %208 = vector.shape_cast %207 : vector<1x1x4x4xf32> to vector<4x4xf32>
    %209 = vector.shape_cast %206 : vector<4x4xf32> to vector<1x1x4x4xf32>
    tpu.vector_store %arg2[%c0_291, %c41, %c0_292, %c0_293], %209 {strides = array<i32>} : memref<1x64x4x4xf32, #tpu.memory_space<vmem>>, vector<1x1x4x4xf32>,
    %c0_294 = arith.constant 0 : index
    %c2_295 = arith.constant 2 : index
    %c8_296 = arith.constant 8 : index
    %c8_297 = arith.constant 8 : index
    %210 = vector.load %arg1[%c0_294, %c2_295, %c8_296, %c8_297] : memref<1x4x16x16xf32, #tpu.memory_space<vmem>>, vector<1x1x4x4xf32>
    %211 = vector.shape_cast %210 : vector<1x1x4x4xf32> to vector<4x4xf32>
    %c0_298 = arith.constant 0 : index
    %c42 = arith.constant 42 : index
    %c0_299 = arith.constant 0 : index
    %c0_300 = arith.constant 0 : index
    %212 = vector.load %arg2[%c0_298, %c42, %c0_299, %c0_300] : memref<1x64x4x4xf32, #tpu.memory_space<vmem>>, vector<1x1x4x4xf32>
    %213 = vector.shape_cast %212 : vector<1x1x4x4xf32> to vector<4x4xf32>
    %214 = vector.shape_cast %211 : vector<4x4xf32> to vector<1x1x4x4xf32>
    tpu.vector_store %arg2[%c0_298, %c42, %c0_299, %c0_300], %214 {strides = array<i32>} : memref<1x64x4x4xf32, #tpu.memory_space<vmem>>, vector<1x1x4x4xf32>,
    %c0_301 = arith.constant 0 : index
    %c2_302 = arith.constant 2 : index
    %c8_303 = arith.constant 8 : index
    %c12_304 = arith.constant 12 : index
    %215 = vector.load %arg1[%c0_301, %c2_302, %c8_303, %c12_304] : memref<1x4x16x16xf32, #tpu.memory_space<vmem>>, vector<1x1x4x4xf32>
    %216 = vector.shape_cast %215 : vector<1x1x4x4xf32> to vector<4x4xf32>
    %c0_305 = arith.constant 0 : index
    %c43 = arith.constant 43 : index
    %c0_306 = arith.constant 0 : index
    %c0_307 = arith.constant 0 : index
    %217 = vector.load %arg2[%c0_305, %c43, %c0_306, %c0_307] : memref<1x64x4x4xf32, #tpu.memory_space<vmem>>, vector<1x1x4x4xf32>
    %218 = vector.shape_cast %217 : vector<1x1x4x4xf32> to vector<4x4xf32>
    %219 = vector.shape_cast %216 : vector<4x4xf32> to vector<1x1x4x4xf32>
    tpu.vector_store %arg2[%c0_305, %c43, %c0_306, %c0_307], %219 {strides = array<i32>} : memref<1x64x4x4xf32, #tpu.memory_space<vmem>>, vector<1x1x4x4xf32>,
    %c0_308 = arith.constant 0 : index
    %c2_309 = arith.constant 2 : index
    %c12_310 = arith.constant 12 : index
    %c0_311 = arith.constant 0 : index
    %220 = vector.load %arg1[%c0_308, %c2_309, %c12_310, %c0_311] : memref<1x4x16x16xf32, #tpu.memory_space<vmem>>, vector<1x1x4x4xf32>
    %221 = vector.shape_cast %220 : vector<1x1x4x4xf32> to vector<4x4xf32>
    %c0_312 = arith.constant 0 : index
    %c44 = arith.constant 44 : index
    %c0_313 = arith.constant 0 : index
    %c0_314 = arith.constant 0 : index
    %222 = vector.load %arg2[%c0_312, %c44, %c0_313, %c0_314] : memref<1x64x4x4xf32, #tpu.memory_space<vmem>>, vector<1x1x4x4xf32>
    %223 = vector.shape_cast %222 : vector<1x1x4x4xf32> to vector<4x4xf32>
    %224 = vector.shape_cast %221 : vector<4x4xf32> to vector<1x1x4x4xf32>
    tpu.vector_store %arg2[%c0_312, %c44, %c0_313, %c0_314], %224 {strides = array<i32>} : memref<1x64x4x4xf32, #tpu.memory_space<vmem>>, vector<1x1x4x4xf32>,
    %c0_315 = arith.constant 0 : index
    %c2_316 = arith.constant 2 : index
    %c12_317 = arith.constant 12 : index
    %c4_318 = arith.constant 4 : index
    %225 = vector.load %arg1[%c0_315, %c2_316, %c12_317, %c4_318] : memref<1x4x16x16xf32, #tpu.memory_space<vmem>>, vector<1x1x4x4xf32>
    %226 = vector.shape_cast %225 : vector<1x1x4x4xf32> to vector<4x4xf32>
    %c0_319 = arith.constant 0 : index
    %c45 = arith.constant 45 : index
    %c0_320 = arith.constant 0 : index
    %c0_321 = arith.constant 0 : index
    %227 = vector.load %arg2[%c0_319, %c45, %c0_320, %c0_321] : memref<1x64x4x4xf32, #tpu.memory_space<vmem>>, vector<1x1x4x4xf32>
    %228 = vector.shape_cast %227 : vector<1x1x4x4xf32> to vector<4x4xf32>
    %229 = vector.shape_cast %226 : vector<4x4xf32> to vector<1x1x4x4xf32>
    tpu.vector_store %arg2[%c0_319, %c45, %c0_320, %c0_321], %229 {strides = array<i32>} : memref<1x64x4x4xf32, #tpu.memory_space<vmem>>, vector<1x1x4x4xf32>,
    %c0_322 = arith.constant 0 : index
    %c2_323 = arith.constant 2 : index
    %c12_324 = arith.constant 12 : index
    %c8_325 = arith.constant 8 : index
    %230 = vector.load %arg1[%c0_322, %c2_323, %c12_324, %c8_325] : memref<1x4x16x16xf32, #tpu.memory_space<vmem>>, vector<1x1x4x4xf32>
    %231 = vector.shape_cast %230 : vector<1x1x4x4xf32> to vector<4x4xf32>
    %c0_326 = arith.constant 0 : index
    %c46 = arith.constant 46 : index
    %c0_327 = arith.constant 0 : index
    %c0_328 = arith.constant 0 : index
    %232 = vector.load %arg2[%c0_326, %c46, %c0_327, %c0_328] : memref<1x64x4x4xf32, #tpu.memory_space<vmem>>, vector<1x1x4x4xf32>
    %233 = vector.shape_cast %232 : vector<1x1x4x4xf32> to vector<4x4xf32>
    %234 = vector.shape_cast %231 : vector<4x4xf32> to vector<1x1x4x4xf32>
    tpu.vector_store %arg2[%c0_326, %c46, %c0_327, %c0_328], %234 {strides = array<i32>} : memref<1x64x4x4xf32, #tpu.memory_space<vmem>>, vector<1x1x4x4xf32>,
    %c0_329 = arith.constant 0 : index
    %c2_330 = arith.constant 2 : index
    %c12_331 = arith.constant 12 : index
    %c12_332 = arith.constant 12 : index
    %235 = vector.load %arg1[%c0_329, %c2_330, %c12_331, %c12_332] : memref<1x4x16x16xf32, #tpu.memory_space<vmem>>, vector<1x1x4x4xf32>
    %236 = vector.shape_cast %235 : vector<1x1x4x4xf32> to vector<4x4xf32>
    %c0_333 = arith.constant 0 : index
    %c47 = arith.constant 47 : index
    %c0_334 = arith.constant 0 : index
    %c0_335 = arith.constant 0 : index
    %237 = vector.load %arg2[%c0_333, %c47, %c0_334, %c0_335] : memref<1x64x4x4xf32, #tpu.memory_space<vmem>>, vector<1x1x4x4xf32>
    %238 = vector.shape_cast %237 : vector<1x1x4x4xf32> to vector<4x4xf32>
    %239 = vector.shape_cast %236 : vector<4x4xf32> to vector<1x1x4x4xf32>
    tpu.vector_store %arg2[%c0_333, %c47, %c0_334, %c0_335], %239 {strides = array<i32>} : memref<1x64x4x4xf32, #tpu.memory_space<vmem>>, vector<1x1x4x4xf32>,
    %c0_336 = arith.constant 0 : index
    %c3_337 = arith.constant 3 : index
    %c0_338 = arith.constant 0 : index
    %c0_339 = arith.constant 0 : index
    %240 = vector.load %arg1[%c0_336, %c3_337, %c0_338, %c0_339] : memref<1x4x16x16xf32, #tpu.memory_space<vmem>>, vector<1x1x4x4xf32>
    %241 = vector.shape_cast %240 : vector<1x1x4x4xf32> to vector<4x4xf32>
    %c0_340 = arith.constant 0 : index
    %c48 = arith.constant 48 : index
    %c0_341 = arith.constant 0 : index
    %c0_342 = arith.constant 0 : index
    %242 = vector.load %arg2[%c0_340, %c48, %c0_341, %c0_342] : memref<1x64x4x4xf32, #tpu.memory_space<vmem>>, vector<1x1x4x4xf32>
    %243 = vector.shape_cast %242 : vector<1x1x4x4xf32> to vector<4x4xf32>
    %244 = vector.shape_cast %241 : vector<4x4xf32> to vector<1x1x4x4xf32>
    tpu.vector_store %arg2[%c0_340, %c48, %c0_341, %c0_342], %244 {strides = array<i32>} : memref<1x64x4x4xf32, #tpu.memory_space<vmem>>, vector<1x1x4x4xf32>,
    %c0_343 = arith.constant 0 : index
    %c3_344 = arith.constant 3 : index
    %c0_345 = arith.constant 0 : index
    %c4_346 = arith.constant 4 : index
    %245 = vector.load %arg1[%c0_343, %c3_344, %c0_345, %c4_346] : memref<1x4x16x16xf32, #tpu.memory_space<vmem>>, vector<1x1x4x4xf32>
    %246 = vector.shape_cast %245 : vector<1x1x4x4xf32> to vector<4x4xf32>
    %c0_347 = arith.constant 0 : index
    %c49 = arith.constant 49 : index
    %c0_348 = arith.constant 0 : index
    %c0_349 = arith.constant 0 : index
    %247 = vector.load %arg2[%c0_347, %c49, %c0_348, %c0_349] : memref<1x64x4x4xf32, #tpu.memory_space<vmem>>, vector<1x1x4x4xf32>
    %248 = vector.shape_cast %247 : vector<1x1x4x4xf32> to vector<4x4xf32>
    %249 = vector.shape_cast %246 : vector<4x4xf32> to vector<1x1x4x4xf32>
    tpu.vector_store %arg2[%c0_347, %c49, %c0_348, %c0_349], %249 {strides = array<i32>} : memref<1x64x4x4xf32, #tpu.memory_space<vmem>>, vector<1x1x4x4xf32>,
    %c0_350 = arith.constant 0 : index
    %c3_351 = arith.constant 3 : index
    %c0_352 = arith.constant 0 : index
    %c8_353 = arith.constant 8 : index
    %250 = vector.load %arg1[%c0_350, %c3_351, %c0_352, %c8_353] : memref<1x4x16x16xf32, #tpu.memory_space<vmem>>, vector<1x1x4x4xf32>
    %251 = vector.shape_cast %250 : vector<1x1x4x4xf32> to vector<4x4xf32>
    %c0_354 = arith.constant 0 : index
    %c50 = arith.constant 50 : index
    %c0_355 = arith.constant 0 : index
    %c0_356 = arith.constant 0 : index
    %252 = vector.load %arg2[%c0_354, %c50, %c0_355, %c0_356] : memref<1x64x4x4xf32, #tpu.memory_space<vmem>>, vector<1x1x4x4xf32>
    %253 = vector.shape_cast %252 : vector<1x1x4x4xf32> to vector<4x4xf32>
    %254 = vector.shape_cast %251 : vector<4x4xf32> to vector<1x1x4x4xf32>
    tpu.vector_store %arg2[%c0_354, %c50, %c0_355, %c0_356], %254 {strides = array<i32>} : memref<1x64x4x4xf32, #tpu.memory_space<vmem>>, vector<1x1x4x4xf32>,
    %c0_357 = arith.constant 0 : index
    %c3_358 = arith.constant 3 : index
    %c0_359 = arith.constant 0 : index
    %c12_360 = arith.constant 12 : index
    %255 = vector.load %arg1[%c0_357, %c3_358, %c0_359, %c12_360] : memref<1x4x16x16xf32, #tpu.memory_space<vmem>>, vector<1x1x4x4xf32>
    %256 = vector.shape_cast %255 : vector<1x1x4x4xf32> to vector<4x4xf32>
    %c0_361 = arith.constant 0 : index
    %c51 = arith.constant 51 : index
    %c0_362 = arith.constant 0 : index
    %c0_363 = arith.constant 0 : index
    %257 = vector.load %arg2[%c0_361, %c51, %c0_362, %c0_363] : memref<1x64x4x4xf32, #tpu.memory_space<vmem>>, vector<1x1x4x4xf32>
    %258 = vector.shape_cast %257 : vector<1x1x4x4xf32> to vector<4x4xf32>
    %259 = vector.shape_cast %256 : vector<4x4xf32> to vector<1x1x4x4xf32>
    tpu.vector_store %arg2[%c0_361, %c51, %c0_362, %c0_363], %259 {strides = array<i32>} : memref<1x64x4x4xf32, #tpu.memory_space<vmem>>, vector<1x1x4x4xf32>,
    %c0_364 = arith.constant 0 : index
    %c3_365 = arith.constant 3 : index
    %c4_366 = arith.constant 4 : index
    %c0_367 = arith.constant 0 : index
    %260 = vector.load %arg1[%c0_364, %c3_365, %c4_366, %c0_367] : memref<1x4x16x16xf32, #tpu.memory_space<vmem>>, vector<1x1x4x4xf32>
    %261 = vector.shape_cast %260 : vector<1x1x4x4xf32> to vector<4x4xf32>
    %c0_368 = arith.constant 0 : index
    %c52 = arith.constant 52 : index
    %c0_369 = arith.constant 0 : index
    %c0_370 = arith.constant 0 : index
    %262 = vector.load %arg2[%c0_368, %c52, %c0_369, %c0_370] : memref<1x64x4x4xf32, #tpu.memory_space<vmem>>, vector<1x1x4x4xf32>
    %263 = vector.shape_cast %262 : vector<1x1x4x4xf32> to vector<4x4xf32>
    %264 = vector.shape_cast %261 : vector<4x4xf32> to vector<1x1x4x4xf32>
    tpu.vector_store %arg2[%c0_368, %c52, %c0_369, %c0_370], %264 {strides = array<i32>} : memref<1x64x4x4xf32, #tpu.memory_space<vmem>>, vector<1x1x4x4xf32>,
    %c0_371 = arith.constant 0 : index
    %c3_372 = arith.constant 3 : index
    %c4_373 = arith.constant 4 : index
    %c4_374 = arith.constant 4 : index
    %265 = vector.load %arg1[%c0_371, %c3_372, %c4_373, %c4_374] : memref<1x4x16x16xf32, #tpu.memory_space<vmem>>, vector<1x1x4x4xf32>
    %266 = vector.shape_cast %265 : vector<1x1x4x4xf32> to vector<4x4xf32>
    %c0_375 = arith.constant 0 : index
    %c53 = arith.constant 53 : index
    %c0_376 = arith.constant 0 : index
    %c0_377 = arith.constant 0 : index
    %267 = vector.load %arg2[%c0_375, %c53, %c0_376, %c0_377] : memref<1x64x4x4xf32, #tpu.memory_space<vmem>>, vector<1x1x4x4xf32>
    %268 = vector.shape_cast %267 : vector<1x1x4x4xf32> to vector<4x4xf32>
    %269 = vector.shape_cast %266 : vector<4x4xf32> to vector<1x1x4x4xf32>
    tpu.vector_store %arg2[%c0_375, %c53, %c0_376, %c0_377], %269 {strides = array<i32>} : memref<1x64x4x4xf32, #tpu.memory_space<vmem>>, vector<1x1x4x4xf32>,
    %c0_378 = arith.constant 0 : index
    %c3_379 = arith.constant 3 : index
    %c4_380 = arith.constant 4 : index
    %c8_381 = arith.constant 8 : index
    %270 = vector.load %arg1[%c0_378, %c3_379, %c4_380, %c8_381] : memref<1x4x16x16xf32, #tpu.memory_space<vmem>>, vector<1x1x4x4xf32>
    %271 = vector.shape_cast %270 : vector<1x1x4x4xf32> to vector<4x4xf32>
    %c0_382 = arith.constant 0 : index
    %c54 = arith.constant 54 : index
    %c0_383 = arith.constant 0 : index
    %c0_384 = arith.constant 0 : index
    %272 = vector.load %arg2[%c0_382, %c54, %c0_383, %c0_384] : memref<1x64x4x4xf32, #tpu.memory_space<vmem>>, vector<1x1x4x4xf32>
    %273 = vector.shape_cast %272 : vector<1x1x4x4xf32> to vector<4x4xf32>
    %274 = vector.shape_cast %271 : vector<4x4xf32> to vector<1x1x4x4xf32>
    tpu.vector_store %arg2[%c0_382, %c54, %c0_383, %c0_384], %274 {strides = array<i32>} : memref<1x64x4x4xf32, #tpu.memory_space<vmem>>, vector<1x1x4x4xf32>,
    %c0_385 = arith.constant 0 : index
    %c3_386 = arith.constant 3 : index
    %c4_387 = arith.constant 4 : index
    %c12_388 = arith.constant 12 : index
    %275 = vector.load %arg1[%c0_385, %c3_386, %c4_387, %c12_388] : memref<1x4x16x16xf32, #tpu.memory_space<vmem>>, vector<1x1x4x4xf32>
    %276 = vector.shape_cast %275 : vector<1x1x4x4xf32> to vector<4x4xf32>
    %c0_389 = arith.constant 0 : index
    %c55 = arith.constant 55 : index
    %c0_390 = arith.constant 0 : index
    %c0_391 = arith.constant 0 : index
    %277 = vector.load %arg2[%c0_389, %c55, %c0_390, %c0_391] : memref<1x64x4x4xf32, #tpu.memory_space<vmem>>, vector<1x1x4x4xf32>
    %278 = vector.shape_cast %277 : vector<1x1x4x4xf32> to vector<4x4xf32>
    %279 = vector.shape_cast %276 : vector<4x4xf32> to vector<1x1x4x4xf32>
    tpu.vector_store %arg2[%c0_389, %c55, %c0_390, %c0_391], %279 {strides = array<i32>} : memref<1x64x4x4xf32, #tpu.memory_space<vmem>>, vector<1x1x4x4xf32>,
    %c0_392 = arith.constant 0 : index
    %c3_393 = arith.constant 3 : index
    %c8_394 = arith.constant 8 : index
    %c0_395 = arith.constant 0 : index
    %280 = vector.load %arg1[%c0_392, %c3_393, %c8_394, %c0_395] : memref<1x4x16x16xf32, #tpu.memory_space<vmem>>, vector<1x1x4x4xf32>
    %281 = vector.shape_cast %280 : vector<1x1x4x4xf32> to vector<4x4xf32>
    %c0_396 = arith.constant 0 : index
    %c56 = arith.constant 56 : index
    %c0_397 = arith.constant 0 : index
    %c0_398 = arith.constant 0 : index
    %282 = vector.load %arg2[%c0_396, %c56, %c0_397, %c0_398] : memref<1x64x4x4xf32, #tpu.memory_space<vmem>>, vector<1x1x4x4xf32>
    %283 = vector.shape_cast %282 : vector<1x1x4x4xf32> to vector<4x4xf32>
    %284 = vector.shape_cast %281 : vector<4x4xf32> to vector<1x1x4x4xf32>
    tpu.vector_store %arg2[%c0_396, %c56, %c0_397, %c0_398], %284 {strides = array<i32>} : memref<1x64x4x4xf32, #tpu.memory_space<vmem>>, vector<1x1x4x4xf32>,
    %c0_399 = arith.constant 0 : index
    %c3_400 = arith.constant 3 : index
    %c8_401 = arith.constant 8 : index
    %c4_402 = arith.constant 4 : index
    %285 = vector.load %arg1[%c0_399, %c3_400, %c8_401, %c4_402] : memref<1x4x16x16xf32, #tpu.memory_space<vmem>>, vector<1x1x4x4xf32>
    %286 = vector.shape_cast %285 : vector<1x1x4x4xf32> to vector<4x4xf32>
    %c0_403 = arith.constant 0 : index
    %c57 = arith.constant 57 : index
    %c0_404 = arith.constant 0 : index
    %c0_405 = arith.constant 0 : index
    %287 = vector.load %arg2[%c0_403, %c57, %c0_404, %c0_405] : memref<1x64x4x4xf32, #tpu.memory_space<vmem>>, vector<1x1x4x4xf32>
    %288 = vector.shape_cast %287 : vector<1x1x4x4xf32> to vector<4x4xf32>
    %289 = vector.shape_cast %286 : vector<4x4xf32> to vector<1x1x4x4xf32>
    tpu.vector_store %arg2[%c0_403, %c57, %c0_404, %c0_405], %289 {strides = array<i32>} : memref<1x64x4x4xf32, #tpu.memory_space<vmem>>, vector<1x1x4x4xf32>,
    %c0_406 = arith.constant 0 : index
    %c3_407 = arith.constant 3 : index
    %c8_408 = arith.constant 8 : index
    %c8_409 = arith.constant 8 : index
    %290 = vector.load %arg1[%c0_406, %c3_407, %c8_408, %c8_409] : memref<1x4x16x16xf32, #tpu.memory_space<vmem>>, vector<1x1x4x4xf32>
    %291 = vector.shape_cast %290 : vector<1x1x4x4xf32> to vector<4x4xf32>
    %c0_410 = arith.constant 0 : index
    %c58 = arith.constant 58 : index
    %c0_411 = arith.constant 0 : index
    %c0_412 = arith.constant 0 : index
    %292 = vector.load %arg2[%c0_410, %c58, %c0_411, %c0_412] : memref<1x64x4x4xf32, #tpu.memory_space<vmem>>, vector<1x1x4x4xf32>
    %293 = vector.shape_cast %292 : vector<1x1x4x4xf32> to vector<4x4xf32>
    %294 = vector.shape_cast %291 : vector<4x4xf32> to vector<1x1x4x4xf32>
    tpu.vector_store %arg2[%c0_410, %c58, %c0_411, %c0_412], %294 {strides = array<i32>} : memref<1x64x4x4xf32, #tpu.memory_space<vmem>>, vector<1x1x4x4xf32>,
    %c0_413 = arith.constant 0 : index
    %c3_414 = arith.constant 3 : index
    %c8_415 = arith.constant 8 : index
    %c12_416 = arith.constant 12 : index
    %295 = vector.load %arg1[%c0_413, %c3_414, %c8_415, %c12_416] : memref<1x4x16x16xf32, #tpu.memory_space<vmem>>, vector<1x1x4x4xf32>
    %296 = vector.shape_cast %295 : vector<1x1x4x4xf32> to vector<4x4xf32>
    %c0_417 = arith.constant 0 : index
    %c59 = arith.constant 59 : index
    %c0_418 = arith.constant 0 : index
    %c0_419 = arith.constant 0 : index
    %297 = vector.load %arg2[%c0_417, %c59, %c0_418, %c0_419] : memref<1x64x4x4xf32, #tpu.memory_space<vmem>>, vector<1x1x4x4xf32>
    %298 = vector.shape_cast %297 : vector<1x1x4x4xf32> to vector<4x4xf32>
    %299 = vector.shape_cast %296 : vector<4x4xf32> to vector<1x1x4x4xf32>
    tpu.vector_store %arg2[%c0_417, %c59, %c0_418, %c0_419], %299 {strides = array<i32>} : memref<1x64x4x4xf32, #tpu.memory_space<vmem>>, vector<1x1x4x4xf32>,
    %c0_420 = arith.constant 0 : index
    %c3_421 = arith.constant 3 : index
    %c12_422 = arith.constant 12 : index
    %c0_423 = arith.constant 0 : index
    %300 = vector.load %arg1[%c0_420, %c3_421, %c12_422, %c0_423] : memref<1x4x16x16xf32, #tpu.memory_space<vmem>>, vector<1x1x4x4xf32>
    %301 = vector.shape_cast %300 : vector<1x1x4x4xf32> to vector<4x4xf32>
    %c0_424 = arith.constant 0 : index
    %c60 = arith.constant 60 : index
    %c0_425 = arith.constant 0 : index
    %c0_426 = arith.constant 0 : index
    %302 = vector.load %arg2[%c0_424, %c60, %c0_425, %c0_426] : memref<1x64x4x4xf32, #tpu.memory_space<vmem>>, vector<1x1x4x4xf32>
    %303 = vector.shape_cast %302 : vector<1x1x4x4xf32> to vector<4x4xf32>
    %304 = vector.shape_cast %301 : vector<4x4xf32> to vector<1x1x4x4xf32>
    tpu.vector_store %arg2[%c0_424, %c60, %c0_425, %c0_426], %304 {strides = array<i32>} : memref<1x64x4x4xf32, #tpu.memory_space<vmem>>, vector<1x1x4x4xf32>,
    %c0_427 = arith.constant 0 : index
    %c3_428 = arith.constant 3 : index
    %c12_429 = arith.constant 12 : index
    %c4_430 = arith.constant 4 : index
    %305 = vector.load %arg1[%c0_427, %c3_428, %c12_429, %c4_430] : memref<1x4x16x16xf32, #tpu.memory_space<vmem>>, vector<1x1x4x4xf32>
    %306 = vector.shape_cast %305 : vector<1x1x4x4xf32> to vector<4x4xf32>
    %c0_431 = arith.constant 0 : index
    %c61 = arith.constant 61 : index
    %c0_432 = arith.constant 0 : index
    %c0_433 = arith.constant 0 : index
    %307 = vector.load %arg2[%c0_431, %c61, %c0_432, %c0_433] : memref<1x64x4x4xf32, #tpu.memory_space<vmem>>, vector<1x1x4x4xf32>
    %308 = vector.shape_cast %307 : vector<1x1x4x4xf32> to vector<4x4xf32>
    %309 = vector.shape_cast %306 : vector<4x4xf32> to vector<1x1x4x4xf32>
    tpu.vector_store %arg2[%c0_431, %c61, %c0_432, %c0_433], %309 {strides = array<i32>} : memref<1x64x4x4xf32, #tpu.memory_space<vmem>>, vector<1x1x4x4xf32>,
    %c0_434 = arith.constant 0 : index
    %c3_435 = arith.constant 3 : index
    %c12_436 = arith.constant 12 : index
    %c8_437 = arith.constant 8 : index
    %310 = vector.load %arg1[%c0_434, %c3_435, %c12_436, %c8_437] : memref<1x4x16x16xf32, #tpu.memory_space<vmem>>, vector<1x1x4x4xf32>
    %311 = vector.shape_cast %310 : vector<1x1x4x4xf32> to vector<4x4xf32>
    %c0_438 = arith.constant 0 : index
    %c62 = arith.constant 62 : index
    %c0_439 = arith.constant 0 : index
    %c0_440 = arith.constant 0 : index
    %312 = vector.load %arg2[%c0_438, %c62, %c0_439, %c0_440] : memref<1x64x4x4xf32, #tpu.memory_space<vmem>>, vector<1x1x4x4xf32>
    %313 = vector.shape_cast %312 : vector<1x1x4x4xf32> to vector<4x4xf32>
    %314 = vector.shape_cast %311 : vector<4x4xf32> to vector<1x1x4x4xf32>
    tpu.vector_store %arg2[%c0_438, %c62, %c0_439, %c0_440], %314 {strides = array<i32>} : memref<1x64x4x4xf32, #tpu.memory_space<vmem>>, vector<1x1x4x4xf32>,
    %c0_441 = arith.constant 0 : index
    %c3_442 = arith.constant 3 : index
    %c12_443 = arith.constant 12 : index
    %c12_444 = arith.constant 12 : index
    %315 = vector.load %arg1[%c0_441, %c3_442, %c12_443, %c12_444] : memref<1x4x16x16xf32, #tpu.memory_space<vmem>>, vector<1x1x4x4xf32>
    %316 = vector.shape_cast %315 : vector<1x1x4x4xf32> to vector<4x4xf32>
    %c0_445 = arith.constant 0 : index
    %c63 = arith.constant 63 : index
    %c0_446 = arith.constant 0 : index
    %c0_447 = arith.constant 0 : index
    %317 = vector.load %arg2[%c0_445, %c63, %c0_446, %c0_447] : memref<1x64x4x4xf32, #tpu.memory_space<vmem>>, vector<1x1x4x4xf32>
    %318 = vector.shape_cast %317 : vector<1x1x4x4xf32> to vector<4x4xf32>
    %319 = vector.shape_cast %316 : vector<4x4xf32> to vector<1x1x4x4xf32>
    tpu.vector_store %arg2[%c0_445, %c63, %c0_446, %c0_447], %319 {strides = array<i32>} : memref<1x64x4x4xf32, #tpu.memory_space<vmem>>, vector<1x1x4x4xf32>,
    return
  }
  func.func @transform_0(%arg0: i32) -> (i32, i32, i32, i32) {
    %c0_i32 = arith.constant 0 : i32
    %c0_i32_0 = arith.constant 0 : i32
    %c0_i32_1 = arith.constant 0 : i32
    %c0_i32_2 = arith.constant 0 : i32
    return %arg0, %c0_i32, %c0_i32_0, %c0_i32_1 : i32, i32, i32, i32
  }
  func.func @transform_1(%arg0: i32) -> (i32, i32, i32, i32) {
    %c0_i32 = arith.constant 0 : i32
    %c0_i32_0 = arith.constant 0 : i32
    %c0_i32_1 = arith.constant 0 : i32
    %c0_i32_2 = arith.constant 0 : i32
    return %arg0, %c0_i32, %c0_i32_0, %c0_i32_1 : i32, i32, i32, i32
  }
}

</mosaic_0001>

<llo_original>
// kernel: tpu_custom_call.1
$region0: #{tpu_custom_call.1}
  #allocation0 [shape = 'u32[]', space=smem, size = 0x4, offset = 0x4, fixed_abs, tag = 'smem constant byte address 0x4 - core index']
  #allocation1 [shape = 'u32[144,128]{1,0:T(1,128)}', space=vmem, size = 0x12000, scoped, tag = 'internal scratch']
  %s0 = inlined_call_operand.hbm [shape: f32[2,4,16,16], index: 0, kind: input, shape index: {}]
  %s1 = inlined_call_operand.vmem [shape: f32[2,64,4,4], index: 1, kind: output, shape index: {}]
  %s2 = sld [smem:[#allocation0]]
  $region41: #{tpu_custom_call.1} parent=0
    _
  %s4 = ssub.s32 1, %s2
  %s5 = scalar_select 0, %s4, %s2
  $region1: #{tpu_custom_call.1} parent=0
    #allocation2 [shape = 'u8[65536]{0}', space=vmem, size = 0x10000, scoped, tag = 'input window, operand 0']
    #allocation3 [shape = 's32[2]{0}', space=sflag, size = 0x8, scoped, tag = 'scoped memory for tpu_custom_call.1']
    %6 = vsyncpa [#allocation3], 0
    %s7 = scalar_lea.sflag [#allocation3], 1
    %8 = vsyncpa %s7, 0
    loop: start=0, step=1, limit=4
    $region2: #{tpu_custom_call.1} parent=1 // loop_pre_header
      _
    $region3: #{tpu_custom_call.1} parent=1 // loop_header
      %s10 = sphi 0, %s14
      %p11 = scmp.ge.s32.totalorder %s10, 4
      %s20 = sphi 0, %s22
      %s23 = sphi 0, %s20
      %s24 = sphi 0, %s23
      %s40 = sphi 0, %s24
      %s46 = sphi 0, %s48
      %s49 = sphi 0, %s46
      %s50 = sphi 0, %s49
      %s66 = sphi 0, %s50
    $region4: #{tpu_custom_call.1} parent=1 // loop_header_branch
      %13 = sbr.rel (%p11) target = $region8
    $region5: #{tpu_custom_call.1} parent=1 // loop_body
      %s15 = ssub.s32 %s10, 1
      %s16 = ssub.s32 %s10, 2
      %s17 = sadd.s32 %s10, 1
      %s18 = ssub.s32 %s10, %s17
      %p19 = scmp.eq.s32.totalorder %s18, 0
      %s21 = sadd.s32 %s20, 1
      %s22 = scalar_select %p19, %s20, %s21
      %p25 = pneg %p19
      %p26 = scmp.eq.s32.totalorder %s10, 1
      %p27 = por %p25, %p26
      %p28 = scmp.ne.s32.totalorder %s20, %s23
      %p29 = scmp.eq.s32.totalorder %s10, 0
      %p30 = por %p28, %p29
      %p31 = scmp.ne.s32.totalorder %s20, %s23
      %p32 = scmp.eq.s32.totalorder %s15, 1
      %p33 = por %p31, %p32
      %p34 = scmp.ne.s32.totalorder %s23, %s24
      %p35 = scmp.eq.s32.totalorder %s15, 0
      %p36 = por %p34, %p35
      %p37 = scmp.ne.s32.totalorder %s23, %s24
      %p38 = scmp.eq.s32.totalorder %s16, 1
      %p39 = por %p37, %p38
      %p41 = scmp.ne.s32.totalorder %s24, %s40
      %p42 = scmp.eq.s32.totalorder %s16, 0
      %p43 = por %p41, %p42
      %s44 = ssub.s32 %s10, %s17
      %p45 = scmp.eq.s32.totalorder %s44, 0
      %s47 = sadd.s32 %s46, 1
      %s48 = scalar_select %p45, %s46, %s47
      %p51 = pneg %p45
      %p52 = scmp.eq.s32.totalorder %s10, 1
      %p53 = por %p51, %p52
      %p54 = scmp.ne.s32.totalorder %s46, %s49
      %p55 = scmp.eq.s32.totalorder %s10, 0
      %p56 = por %p54, %p55
      %p57 = scmp.ne.s32.totalorder %s46, %s49
      %p58 = scmp.eq.s32.totalorder %s15, 1
      %p59 = por %p57, %p58
      %p60 = scmp.ne.s32.totalorder %s49, %s50
      %p61 = scmp.eq.s32.totalorder %s15, 0
      %p62 = por %p60, %p61
      %p63 = scmp.ne.s32.totalorder %s49, %s50
      %p64 = scmp.eq.s32.totalorder %s16, 1
      %p65 = por %p63, %p64
      %p67 = scmp.ne.s32.totalorder %s50, %s66
      %p68 = scmp.eq.s32.totalorder %s16, 0
      %p69 = por %p67, %p68
      %p70 = scmp.le.s32.totalorder 1, %s10
      %p71 = scmp.lt.s32.totalorder %s10, 3
      %p72 = pnand %p70, %p71
      %p73 = pneg %p72
      // Predicated region
      $region9: #{tpu_custom_call.1} parent=5 // pred_check
        _
      $region10: #{tpu_custom_call.1} parent=5 // pred_check_branch
        %75 = sbr.rel (%p72) target = $region12
      $region11: #{tpu_custom_call.1} parent=5 // pred_region
        %s76 = ssub.s32 %s10, 1
      $region12: #{tpu_custom_call.1} parent=5 // pred_fallthru
        _
      %p77 = scmp.lt.s32.totalorder %s10, 2
      // Predicated region
      $region13: #{tpu_custom_call.1} parent=5 // pred_check
        %p78 = pneg %p77
      $region14: #{tpu_custom_call.1} parent=5 // pred_check_branch
        %80 = sbr.rel (%p78) target = $region16
      $region15: #{tpu_custom_call.1} parent=5 // pred_region
        // Predicated region
        $region17: #{tpu_custom_call.1} parent=15 // pred_check
          %p81 = pneg %p30
        $region18: #{tpu_custom_call.1} parent=15 // pred_check_branch
          %83 = sbr.rel (%p81) target = $region20
        $region19: #{tpu_custom_call.1} parent=15 // pred_region
          %s84 = sand.u32 %s20, 1
          %s85 = scalar_lea.sflag [#allocation3], %s84
          %s86 = sand.u32 %s20, 1
          %s87 = smul.addr %s86, 64
          %s88 = scalar_lea.vmem [#allocation2], %s87
          %s90 = ssub.s32 1024, 1024
          %91 = vsyncadd %s85, %s90
          %s92 = smul.addr %s10, 8
          %s93 = smul.addr %s92, 128
          %s94 = scalar_lea.hbm %s0, %s93
          %s95 = sshll.u32 %s88, 4
          %s96 = int_to_ptr.vmem [resolvable:$true] %s95
          %101 = dma.hbm_to_vmem [thread:$0]  %s94, 1024, %s96, %s85, 128, 128, 8
        $region20: #{tpu_custom_call.1} parent=15 // pred_fallthru
          _
      $region16: #{tpu_custom_call.1} parent=5 // pred_fallthru
        _
      %p102 = scmp.le.s32.totalorder 1, %s10
      %p103 = scmp.lt.s32.totalorder %s10, 3
      %p104 = pnand %p102, %p103
      %p105 = pneg %p104
      // Predicated region
      $region21: #{tpu_custom_call.1} parent=5 // pred_check
        _
      $region22: #{tpu_custom_call.1} parent=5 // pred_check_branch
        %107 = sbr.rel (%p104) target = $region24
      $region23: #{tpu_custom_call.1} parent=5 // pred_region
        %s108 = ssub.s32 %s10, 1
        %s109 = sand.u32 %s23, 1
        %s110 = scalar_lea.sflag [#allocation3], %s109
        %s111 = sand.u32 %s23, 1
        %s112 = smul.addr %s111, 64
        %s113 = scalar_lea.vmem [#allocation2], %s112
        // Predicated region
        $region25: #{tpu_custom_call.1} parent=23 // pred_check
          %p114 = pneg %p36
        $region26: #{tpu_custom_call.1} parent=23 // pred_check_branch
          %116 = sbr.rel (%p114) target = $region28
        $region27: #{tpu_custom_call.1} parent=23 // pred_region
          %117 = dma.done %s110, 1024
        $region28: #{tpu_custom_call.1} parent=23 // pred_fallthru
          _
        %s118 = sand.u32 %s23, 1
        %s119 = scalar_lea.sflag [#allocation3], %s118
        %s120 = sand.u32 %s23, 1
        %s121 = smul.addr %s120, 64
        %s122 = scalar_lea.vmem [#allocation2], %s121
        %p123 = pneg %p36
        %p124 = pneg %p33
        %p125 = pneg %p62
        %p126 = pneg %p59
        %p127 = scmp.lt.s32.totalorder %s15, 1
        %s128 = scalar_select %p127, %s15, 1
        %s129 = smul.addr %s128, 64
        %s130 = smul.addr %s129, 4
        %s131 = scalar_lea.vmem %s1, %s130
        %p132 = scmp.lt.s32.totalorder %s15, 1
        %s133 = scalar_select %p132, %s15, 1
        %s134 = smul.addr %s133, 64
        %s135 = smul.addr %s134, 4
        %s136 = scalar_lea.vmem %s1, %s135
        %v137 = vld [vmem:[%s113] sm:$0xf]
        %vm138 = vcmask 27648
        %139 = vst.msk [vmem:[%s136] sm:$0xf] %vm138, %v137
        %v140 = vld [vmem:[%s113] sm:$0xf]
        %142 = vrot.lane.b32.xlu0 %v140, 124
        %v143 = vpop.permute.xlu0 %142
        %s145 = scalar_lea.vmem %s136, 4
        %146 = vst.msk [vmem:[%s145] sm:$0xf] %vm138, %v143
        %v147 = vld [vmem:[%s113] sm:$0xf]
        %149 = vrot.lane.b32.xlu0 %v147, 120
        %v150 = vpop.permute.xlu0 %149
        %s152 = scalar_lea.vmem %s136, 8
        %153 = vst.msk [vmem:[%s152] sm:$0xf] %vm138, %v150
        %v154 = vld [vmem:[%s113] sm:$0xf]
        %156 = vrot.lane.b32.xlu0 %v154, 116
        %v157 = vpop.permute.xlu0 %156
        %s159 = scalar_lea.vmem %s136, 12
        %160 = vst.msk [vmem:[%s159] sm:$0xf] %vm138, %v157
        %v161 = vld [vmem:[%s113 + $0x4] sm:$0xf]
        %s162 = scalar_lea.vmem %s136, 16
        %163 = vst.msk [vmem:[%s162] sm:$0xf] %vm138, %v161
        %v164 = vld [vmem:[%s113 + $0x4] sm:$0xf]
        %166 = vrot.lane.b32.xlu0 %v164, 124
        %v167 = vpop.permute.xlu0 %166
        %s169 = scalar_lea.vmem %s136, 20
        %170 = vst.msk [vmem:[%s169] sm:$0xf] %vm138, %v167
        %v171 = vld [vmem:[%s113 + $0x4] sm:$0xf]
        %173 = vrot.lane.b32.xlu0 %v171, 120
        %v174 = vpop.permute.xlu0 %173
        %s176 = scalar_lea.vmem %s136, 24
        %177 = vst.msk [vmem:[%s176] sm:$0xf] %vm138, %v174
        %v178 = vld [vmem:[%s113 + $0x4] sm:$0xf]
        %180 = vrot.lane.b32.xlu0 %v178, 116
        %v181 = vpop.permute.xlu0 %180
        %s183 = scalar_lea.vmem %s136, 28
        %184 = vst.msk [vmem:[%s183] sm:$0xf] %vm138, %v181
        %v185 = vld [vmem:[%s113 + $0x8] sm:$0xf]
        %s186 = scalar_lea.vmem %s136, 32
        %187 = vst.msk [vmem:[%s186] sm:$0xf] %vm138, %v185
        %v188 = vld [vmem:[%s113 + $0x8] sm:$0xf]
        %190 = vrot.lane.b32.xlu0 %v188, 124
        %v191 = vpop.permute.xlu0 %190
        %s193 = scalar_lea.vmem %s136, 36
        %194 = vst.msk [vmem:[%s193] sm:$0xf] %vm138, %v191
        %v195 = vld [vmem:[%s113 + $0x8] sm:$0xf]
        %197 = vrot.lane.b32.xlu0 %v195, 120
        %v198 = vpop.permute.xlu0 %197
        %s200 = scalar_lea.vmem %s136, 40
        %201 = vst.msk [vmem:[%s200] sm:$0xf] %vm138, %v198
        %v202 = vld [vmem:[%s113 + $0x8] sm:$0xf]
        %204 = vrot.lane.b32.xlu0 %v202, 116
        %v205 = vpop.permute.xlu0 %204
        %s207 = scalar_lea.vmem %s136, 44
        %208 = vst.msk [vmem:[%s207] sm:$0xf] %vm138, %v205
        %v209 = vld [vmem:[%s113 + $0xc] sm:$0xf]
        %s210 = scalar_lea.vmem %s136, 48
        %211 = vst.msk [vmem:[%s210] sm:$0xf] %vm138, %v209
        %v212 = vld [vmem:[%s113 + $0xc] sm:$0xf]
        %214 = vrot.lane.b32.xlu0 %v212, 124
        %v215 = vpop.permute.xlu0 %214
        %s217 = scalar_lea.vmem %s136, 52
        %218 = vst.msk [vmem:[%s217] sm:$0xf] %vm138, %v215
        %v219 = vld [vmem:[%s113 + $0xc] sm:$0xf]
        %221 = vrot.lane.b32.xlu0 %v219, 120
        %v222 = vpop.permute.xlu0 %221
        %s224 = scalar_lea.vmem %s136, 56
        %225 = vst.msk [vmem:[%s224] sm:$0xf] %vm138, %v222
        %v226 = vld [vmem:[%s113 + $0xc] sm:$0xf]
        %228 = vrot.lane.b32.xlu0 %v226, 116
        %v229 = vpop.permute.xlu0 %228
        %s231 = scalar_lea.vmem %s136, 60
        %232 = vst.msk [vmem:[%s231] sm:$0xf] %vm138, %v229
        %s233 = scalar_lea.vmem %s113, 16 [#allocation2]
        %v234 = vld [vmem:[%s233] sm:$0xf]
        %s235 = scalar_lea.vmem %s136, 64
        %236 = vst.msk [vmem:[%s235] sm:$0xf] %vm138, %v234
        %v237 = vld [vmem:[%s233] sm:$0xf]
        %239 = vrot.lane.b32.xlu0 %v237, 124
        %v240 = vpop.permute.xlu0 %239
        %s242 = scalar_lea.vmem %s136, 68
        %243 = vst.msk [vmem:[%s242] sm:$0xf] %vm138, %v240
        %v244 = vld [vmem:[%s233] sm:$0xf]
        %246 = vrot.lane.b32.xlu0 %v244, 120
        %v247 = vpop.permute.xlu0 %246
        %s249 = scalar_lea.vmem %s136, 72
        %250 = vst.msk [vmem:[%s249] sm:$0xf] %vm138, %v247
        %v251 = vld [vmem:[%s233] sm:$0xf]
        %253 = vrot.lane.b32.xlu0 %v251, 116
        %v254 = vpop.permute.xlu0 %253
        %s256 = scalar_lea.vmem %s136, 76
        %257 = vst.msk [vmem:[%s256] sm:$0xf] %vm138, %v254
        %v258 = vld [vmem:[%s233 + $0x4] sm:$0xf]
        %s259 = scalar_lea.vmem %s136, 80
        %260 = vst.msk [vmem:[%s259] sm:$0xf] %vm138, %v258
        %v261 = vld [vmem:[%s233 + $0x4] sm:$0xf]
        %263 = vrot.lane.b32.xlu0 %v261, 124
        %v264 = vpop.permute.xlu0 %263
        %s266 = scalar_lea.vmem %s136, 84
        %267 = vst.msk [vmem:[%s266] sm:$0xf] %vm138, %v264
        %v268 = vld [vmem:[%s233 + $0x4] sm:$0xf]
        %270 = vrot.lane.b32.xlu0 %v268, 120
        %v271 = vpop.permute.xlu0 %270
        %s273 = scalar_lea.vmem %s136, 88
        %274 = vst.msk [vmem:[%s273] sm:$0xf] %vm138, %v271
        %v275 = vld [vmem:[%s233 + $0x4] sm:$0xf]
        %277 = vrot.lane.b32.xlu0 %v275, 116
        %v278 = vpop.permute.xlu0 %277
        %s280 = scalar_lea.vmem %s136, 92
        %281 = vst.msk [vmem:[%s280] sm:$0xf] %vm138, %v278
        %v282 = vld [vmem:[%s233 + $0x8] sm:$0xf]
        %s283 = scalar_lea.vmem %s136, 96
        %284 = vst.msk [vmem:[%s283] sm:$0xf] %vm138, %v282
        %v285 = vld [vmem:[%s233 + $0x8] sm:$0xf]
        %287 = vrot.lane.b32.xlu0 %v285, 124
        %v288 = vpop.permute.xlu0 %287
        %s290 = scalar_lea.vmem %s136, 100
        %291 = vst.msk [vmem:[%s290] sm:$0xf] %vm138, %v288
        %v292 = vld [vmem:[%s233 + $0x8] sm:$0xf]
        %294 = vrot.lane.b32.xlu0 %v292, 120
        %v295 = vpop.permute.xlu0 %294
        %s297 = scalar_lea.vmem %s136, 104
        %298 = vst.msk [vmem:[%s297] sm:$0xf] %vm138, %v295
        %v299 = vld [vmem:[%s233 + $0x8] sm:$0xf]
        %301 = vrot.lane.b32.xlu0 %v299, 116
        %v302 = vpop.permute.xlu0 %301
        %s304 = scalar_lea.vmem %s136, 108
        %305 = vst.msk [vmem:[%s304] sm:$0xf] %vm138, %v302
        %v306 = vld [vmem:[%s233 + $0xc] sm:$0xf]
        %s307 = scalar_lea.vmem %s136, 112
        %308 = vst.msk [vmem:[%s307] sm:$0xf] %vm138, %v306
        %v309 = vld [vmem:[%s233 + $0xc] sm:$0xf]
        %311 = vrot.lane.b32.xlu0 %v309, 124
        %v312 = vpop.permute.xlu0 %311
        %s314 = scalar_lea.vmem %s136, 116
        %315 = vst.msk [vmem:[%s314] sm:$0xf] %vm138, %v312
        %v316 = vld [vmem:[%s233 + $0xc] sm:$0xf]
        %318 = vrot.lane.b32.xlu0 %v316, 120
        %v319 = vpop.permute.xlu0 %318
        %s321 = scalar_lea.vmem %s136, 120
        %322 = vst.msk [vmem:[%s321] sm:$0xf] %vm138, %v319
        %v323 = vld [vmem:[%s233 + $0xc] sm:$0xf]
        %325 = vrot.lane.b32.xlu0 %v323, 116
        %v326 = vpop.permute.xlu0 %325
        %s328 = scalar_lea.vmem %s136, 124
        %329 = vst.msk [vmem:[%s328] sm:$0xf] %vm138, %v326
        %s330 = scalar_lea.vmem %s113, 32 [#allocation2]
        %v331 = vld [vmem:[%s330] sm:$0xf]
        %s332 = scalar_lea.vmem %s136, 128
        %333 = vst.msk [vmem:[%s332] sm:$0xf] %vm138, %v331
        %v334 = vld [vmem:[%s330] sm:$0xf]
        %336 = vrot.lane.b32.xlu0 %v334, 124
        %v337 = vpop.permute.xlu0 %336
        %s339 = scalar_lea.vmem %s136, 132
        %340 = vst.msk [vmem:[%s339] sm:$0xf] %vm138, %v337
        %v341 = vld [vmem:[%s330] sm:$0xf]
        %343 = vrot.lane.b32.xlu0 %v341, 120
        %v344 = vpop.permute.xlu0 %343
        %s346 = scalar_lea.vmem %s136, 136
        %347 = vst.msk [vmem:[%s346] sm:$0xf] %vm138, %v344
        %v348 = vld [vmem:[%s330] sm:$0xf]
        %350 = vrot.lane.b32.xlu0 %v348, 116
        %v351 = vpop.permute.xlu0 %350
        %s353 = scalar_lea.vmem %s136, 140
        %354 = vst.msk [vmem:[%s353] sm:$0xf] %vm138, %v351
        %v355 = vld [vmem:[%s330 + $0x4] sm:$0xf]
        %s356 = scalar_lea.vmem %s136, 144
        %357 = vst.msk [vmem:[%s356] sm:$0xf] %vm138, %v355
        %v358 = vld [vmem:[%s330 + $0x4] sm:$0xf]
        %360 = vrot.lane.b32.xlu0 %v358, 124
        %v361 = vpop.permute.xlu0 %360
        %s363 = scalar_lea.vmem %s136, 148
        %364 = vst.msk [vmem:[%s363] sm:$0xf] %vm138, %v361
        %v365 = vld [vmem:[%s330 + $0x4] sm:$0xf]
        %367 = vrot.lane.b32.xlu0 %v365, 120
        %v368 = vpop.permute.xlu0 %367
        %s370 = scalar_lea.vmem %s136, 152
        %371 = vst.msk [vmem:[%s370] sm:$0xf] %vm138, %v368
        %v372 = vld [vmem:[%s330 + $0x4] sm:$0xf]
        %374 = vrot.lane.b32.xlu0 %v372, 116
        %v375 = vpop.permute.xlu0 %374
        %s377 = scalar_lea.vmem %s136, 156
        %378 = vst.msk [vmem:[%s377] sm:$0xf] %vm138, %v375
        %v379 = vld [vmem:[%s330 + $0x8] sm:$0xf]
        %s380 = scalar_lea.vmem %s136, 160
        %381 = vst.msk [vmem:[%s380] sm:$0xf] %vm138, %v379
        %v382 = vld [vmem:[%s330 + $0x8] sm:$0xf]
        %384 = vrot.lane.b32.xlu0 %v382, 124
        %v385 = vpop.permute.xlu0 %384
        %s387 = scalar_lea.vmem %s136, 164
        %388 = vst.msk [vmem:[%s387] sm:$0xf] %vm138, %v385
        %v389 = vld [vmem:[%s330 + $0x8] sm:$0xf]
        %391 = vrot.lane.b32.xlu0 %v389, 120
        %v392 = vpop.permute.xlu0 %391
        %s394 = scalar_lea.vmem %s136, 168
        %395 = vst.msk [vmem:[%s394] sm:$0xf] %vm138, %v392
        %v396 = vld [vmem:[%s330 + $0x8] sm:$0xf]
        %398 = vrot.lane.b32.xlu0 %v396, 116
        %v399 = vpop.permute.xlu0 %398
        %s401 = scalar_lea.vmem %s136, 172
        %402 = vst.msk [vmem:[%s401] sm:$0xf] %vm138, %v399
        %v403 = vld [vmem:[%s330 + $0xc] sm:$0xf]
        %s404 = scalar_lea.vmem %s136, 176
        %405 = vst.msk [vmem:[%s404] sm:$0xf] %vm138, %v403
        %v406 = vld [vmem:[%s330 + $0xc] sm:$0xf]
        %408 = vrot.lane.b32.xlu0 %v406, 124
        %v409 = vpop.permute.xlu0 %408
        %s411 = scalar_lea.vmem %s136, 180
        %412 = vst.msk [vmem:[%s411] sm:$0xf] %vm138, %v409
        %v413 = vld [vmem:[%s330 + $0xc] sm:$0xf]
        %415 = vrot.lane.b32.xlu0 %v413, 120
        %v416 = vpop.permute.xlu0 %415
        %s418 = scalar_lea.vmem %s136, 184
        %419 = vst.msk [vmem:[%s418] sm:$0xf] %vm138, %v416
        %v420 = vld [vmem:[%s330 + $0xc] sm:$0xf]
        %422 = vrot.lane.b32.xlu0 %v420, 116
        %v423 = vpop.permute.xlu0 %422
        %s425 = scalar_lea.vmem %s136, 188
        %426 = vst.msk [vmem:[%s425] sm:$0xf] %vm138, %v423
        %s427 = scalar_lea.vmem %s113, 48 [#allocation2]
        %v428 = vld [vmem:[%s427] sm:$0xf]
        %s429 = scalar_lea.vmem %s136, 192
        %430 = vst.msk [vmem:[%s429] sm:$0xf] %vm138, %v428
        %v431 = vld [vmem:[%s427] sm:$0xf]
        %433 = vrot.lane.b32.xlu0 %v431, 124
        %v434 = vpop.permute.xlu0 %433
        %s436 = scalar_lea.vmem %s136, 196
        %437 = vst.msk [vmem:[%s436] sm:$0xf] %vm138, %v434
        %v438 = vld [vmem:[%s427] sm:$0xf]
        %440 = vrot.lane.b32.xlu0 %v438, 120
        %v441 = vpop.permute.xlu0 %440
        %s443 = scalar_lea.vmem %s136, 200
        %444 = vst.msk [vmem:[%s443] sm:$0xf] %vm138, %v441
        %v445 = vld [vmem:[%s427] sm:$0xf]
        %447 = vrot.lane.b32.xlu0 %v445, 116
        %v448 = vpop.permute.xlu0 %447
        %s450 = scalar_lea.vmem %s136, 204
        %451 = vst.msk [vmem:[%s450] sm:$0xf] %vm138, %v448
        %v452 = vld [vmem:[%s427 + $0x4] sm:$0xf]
        %s453 = scalar_lea.vmem %s136, 208
        %454 = vst.msk [vmem:[%s453] sm:$0xf] %vm138, %v452
        %v455 = vld [vmem:[%s427 + $0x4] sm:$0xf]
        %457 = vrot.lane.b32.xlu0 %v455, 124
        %v458 = vpop.permute.xlu0 %457
        %s460 = scalar_lea.vmem %s136, 212
        %461 = vst.msk [vmem:[%s460] sm:$0xf] %vm138, %v458
        %v462 = vld [vmem:[%s427 + $0x4] sm:$0xf]
        %464 = vrot.lane.b32.xlu0 %v462, 120
        %v465 = vpop.permute.xlu0 %464
        %s467 = scalar_lea.vmem %s136, 216
        %468 = vst.msk [vmem:[%s467] sm:$0xf] %vm138, %v465
        %v469 = vld [vmem:[%s427 + $0x4] sm:$0xf]
        %471 = vrot.lane.b32.xlu0 %v469, 116
        %v472 = vpop.permute.xlu0 %471
        %s474 = scalar_lea.vmem %s136, 220
        %475 = vst.msk [vmem:[%s474] sm:$0xf] %vm138, %v472
        %v476 = vld [vmem:[%s427 + $0x8] sm:$0xf]
        %s477 = scalar_lea.vmem %s136, 224
        %478 = vst.msk [vmem:[%s477] sm:$0xf] %vm138, %v476
        %v479 = vld [vmem:[%s427 + $0x8] sm:$0xf]
        %481 = vrot.lane.b32.xlu0 %v479, 124
        %v482 = vpop.permute.xlu0 %481
        %s484 = scalar_lea.vmem %s136, 228
        %485 = vst.msk [vmem:[%s484] sm:$0xf] %vm138, %v482
        %v486 = vld [vmem:[%s427 + $0x8] sm:$0xf]
        %488 = vrot.lane.b32.xlu0 %v486, 120
        %v489 = vpop.permute.xlu0 %488
        %s491 = scalar_lea.vmem %s136, 232
        %492 = vst.msk [vmem:[%s491] sm:$0xf] %vm138, %v489
        %v493 = vld [vmem:[%s427 + $0x8] sm:$0xf]
        %495 = vrot.lane.b32.xlu0 %v493, 116
        %v496 = vpop.permute.xlu0 %495
        %s498 = scalar_lea.vmem %s136, 236
        %499 = vst.msk [vmem:[%s498] sm:$0xf] %vm138, %v496
        %v500 = vld [vmem:[%s427 + $0xc] sm:$0xf]
        %s501 = scalar_lea.vmem %s136, 240
        %502 = vst.msk [vmem:[%s501] sm:$0xf] %vm138, %v500
        %v503 = vld [vmem:[%s427 + $0xc] sm:$0xf]
        %505 = vrot.lane.b32.xlu0 %v503, 124
        %v506 = vpop.permute.xlu0 %505
        %s508 = scalar_lea.vmem %s136, 244
        %509 = vst.msk [vmem:[%s508] sm:$0xf] %vm138, %v506
        %v510 = vld [vmem:[%s427 + $0xc] sm:$0xf]
        %512 = vrot.lane.b32.xlu0 %v510, 120
        %v513 = vpop.permute.xlu0 %512
        %s515 = scalar_lea.vmem %s136, 248
        %516 = vst.msk [vmem:[%s515] sm:$0xf] %vm138, %v513
        %v517 = vld [vmem:[%s427 + $0xc] sm:$0xf]
        %519 = vrot.lane.b32.xlu0 %v517, 116
        %v520 = vpop.permute.xlu0 %519
        %s522 = scalar_lea.vmem %s136, 252
        %523 = vst.msk [vmem:[%s522] sm:$0xf] %vm138, %v520
        %p524 = scmp.lt.s32.totalorder %s15, 1
        %s525 = scalar_select %p524, %s15, 1
        %s526 = smul.addr %s525, 64
        %s527 = smul.addr %s526, 4
        %s528 = scalar_lea.vmem %s1, %s527
        // Predicated region
        $region29: #{tpu_custom_call.1} parent=23 // pred_check
          %p529 = pneg %p59
        $region30: #{tpu_custom_call.1} parent=23 // pred_check_branch
          %531 = sbr.rel (%p529) target = $region32
        $region31: #{tpu_custom_call.1} parent=23 // pred_region
          _
        $region32: #{tpu_custom_call.1} parent=23 // pred_fallthru
          _
      $region24: #{tpu_custom_call.1} parent=5 // pred_fallthru
        _
      %p532 = scmp.le.s32.totalorder 2, %s10
      // Predicated region
      $region33: #{tpu_custom_call.1} parent=5 // pred_check
        %p533 = pneg %p532
      $region34: #{tpu_custom_call.1} parent=5 // pred_check_branch
        %535 = sbr.rel (%p533) target = $region36
      $region35: #{tpu_custom_call.1} parent=5 // pred_region
        %s536 = ssub.s32 %s10, 2
        // Predicated region
        $region37: #{tpu_custom_call.1} parent=35 // pred_check
          %p537 = pneg %p65
        $region38: #{tpu_custom_call.1} parent=35 // pred_check_branch
          %539 = sbr.rel (%p537) target = $region40
        $region39: #{tpu_custom_call.1} parent=35 // pred_region
          %p540 = scmp.lt.s32.totalorder %s16, 1
          %s541 = scalar_select %p540, %s16, 1
          %s542 = smul.addr %s541, 64
          %s543 = smul.addr %s542, 4
          %s544 = scalar_lea.vmem %s1, %s543
        $region40: #{tpu_custom_call.1} parent=35 // pred_fallthru
          _
      $region36: #{tpu_custom_call.1} parent=5 // pred_fallthru
        _
    $region6: #{tpu_custom_call.1} parent=1 // loop_footer
      %s14 = sadd.s32 1, %s10
    $region7: #{tpu_custom_call.1} parent=1 // loop_footer_branch
      %9 = sbr.rel target = $region3
    $region8: #{tpu_custom_call.1} parent=1 // loop_exit
      _
    %545 = vsyncpa [#allocation3], 1
    %s546 = scalar_lea.sflag [#allocation3], 1
    %547 = vsyncpa %s546, 1

</llo_original>
